<compile_context>
chip_gen: v6e
topology: v6e:2x2x1
jax: 0.10.0
libtpu: 0.0.40
codegen_flags: <defaults>
</compile_context>

<pallas_src>
import functools

import jax
import jax.numpy as jnp
from jax.experimental import pallas as pl
from jax.experimental.pallas import tpu as pltpu


# ----------------------------------------------------------------------------
# Fused kernel: per batch element -> QKV projections, multi-head attention,
# head merge, output projection.
# ----------------------------------------------------------------------------
def fused_attention_kernel(q_in_ref, k_in_ref, v_in_ref, bias_ref,
                           wq_ref, bq_ref, wk_ref, bk_ref,
                           wv_ref, bv_ref, wo_ref, bo_ref,
                           o_ref, *, heads, scale):
    x_q = q_in_ref[0]          # (Lq, E)
    x_k = k_in_ref[0]          # (Lk, E)
    x_v = v_in_ref[0]          # (Lv, E)  (Lv == Lk)
    bias = bias_ref[0, 0]      # (Lq, Lk)  additive mask bias: 0 or -1e20

    def linear(x, w_ref, b_ref):
        # y = x @ W.T + b  (PyTorch nn.Linear weight layout (out, in)).
        # Contract in_features of both operands directly -- no W.T copy.
        y = jax.lax.dot_general(
            x, w_ref[...],
            dimension_numbers=(((1,), (1,)), ((), ())),
            preferred_element_type=jnp.float32)
        return y + b_ref[...]                       # (L, E) + (1, E)

    q_p = linear(x_q, wq_ref, bq_ref)               # (Lq, E)
    k_p = linear(x_k, wk_ref, bk_ref)               # (Lk, E)
    v_p = linear(x_v, wv_ref, bv_ref)               # (Lk, E)

    embed = q_p.shape[-1]
    head_dim = embed // heads

    ctx_heads = []
    for h in range(heads):                          # static, unrolled
        lo = h * head_dim
        qh = q_p[:, lo:lo + head_dim]               # (Lq, D)
        kh = k_p[:, lo:lo + head_dim]               # (Lk, D)
        vh = v_p[:, lo:lo + head_dim]               # (Lk, D)

        # energy = q k^T : contract head_dim of both operands (no k.T copy).
        energy = jax.lax.dot_general(
            qh, kh, dimension_numbers=(((1,), (1,)), ((), ())),
            preferred_element_type=jnp.float32)     # (Lq, Lk)

        logits = (energy + bias) * jnp.float32(scale)
        m = jnp.max(logits, axis=-1, keepdims=True)
        p = jnp.exp(logits - m)
        denom = jnp.sum(p, axis=-1, keepdims=True)
        attn = p * pl.reciprocal(denom, approx=True)

        ctx_heads.append(
            jnp.dot(attn, vh, preferred_element_type=jnp.float32))  # (Lq, D)

    ctx = jnp.concatenate(ctx_heads, axis=-1)       # (Lq, E)  merged heads

    out = jax.lax.dot_general(
        ctx, wo_ref[...], dimension_numbers=(((1,), (1,)), ((), ())),
        preferred_element_type=jnp.float32) + bo_ref[...]
    o_ref[0] = out.astype(o_ref.dtype)              # lane-dense (Lq, E) store


# ----------------------------------------------------------------------------
# Module wrapper (mirrors SelfAttention.forward)
# ----------------------------------------------------------------------------
def _self_attention_forward(params, values, keys, query, mask, *, heads):
    N, query_len, embed_size = query.shape
    key_len = keys.shape[1]
    value_len = values.shape[1]
    assert key_len == value_len, "attention requires key_len == value_len"
    assert embed_size % heads == 0
    scale = 1.0 / (embed_size ** 0.5)

    # 0/1 mask -> additive bias (0 visible, -1e20 masked), computed once.
    mask_bias = jnp.where(mask == 0, jnp.float32(-1e20), jnp.float32(0.0))

    kernel = functools.partial(fused_attention_kernel,
                               heads=heads, scale=scale)

    full2d = lambda n: (0, 0)   # weights/biases: same block every grid step

    return pl.pallas_call(
        kernel,
        out_shape=jax.ShapeDtypeStruct((N, query_len, embed_size),
                                       jnp.float32),
        grid=(N,),
        in_specs=[
            pl.BlockSpec((1, query_len, embed_size), lambda n: (n, 0, 0)),
            pl.BlockSpec((1, key_len, embed_size), lambda n: (n, 0, 0)),
            pl.BlockSpec((1, value_len, embed_size), lambda n: (n, 0, 0)),
            pl.BlockSpec((1, 1, query_len, key_len), lambda n: (n, 0, 0, 0)),
            pl.BlockSpec((embed_size, embed_size), full2d),   # wq
            pl.BlockSpec((1, embed_size), full2d),            # bq
            pl.BlockSpec((embed_size, embed_size), full2d),   # wk
            pl.BlockSpec((1, embed_size), full2d),            # bk
            pl.BlockSpec((embed_size, embed_size), full2d),   # wv
            pl.BlockSpec((1, embed_size), full2d),            # bv
            pl.BlockSpec((embed_size, embed_size), full2d),   # wo
            pl.BlockSpec((1, embed_size), full2d),            # bo
        ],
        out_specs=pl.BlockSpec((1, query_len, embed_size),
                               lambda n: (n, 0, 0)),
        compiler_params=pltpu.CompilerParams(
            dimension_semantics=("parallel",)),
    )(query, keys, values, mask_bias,
      params["wq"], params["bq"].reshape(1, embed_size),
      params["wk"], params["bk"].reshape(1, embed_size),
      params["wv"], params["bv"].reshape(1, embed_size),
      params["wo"], params["bo"].reshape(1, embed_size))


self_attention_forward = jax.jit(_self_attention_forward,
                                 static_argnames=("heads",))


# ----------------------------------------------------------------------------
# Pure-JAX reference (matches PyTorch semantics, for correctness check)
# ----------------------------------------------------------------------------
def reference_forward(params, values, keys, query, mask, *, heads):
    N, value_len, embed_size = values.shape
    key_len, query_len = keys.shape[1], query.shape[1]
    head_dim = embed_size // heads

    v_p = values @ params["wv"].T + params["bv"]
    k_p = keys @ params["wk"].T + params["bk"]
    q_p = query @ params["wq"].T + params["bq"]

    v_p = v_p.reshape(N, value_len, heads, head_dim)
    k_p = k_p.reshape(N, key_len, heads, head_dim)
    q_p = q_p.reshape(N, query_len, heads, head_dim)

    energy = jnp.einsum("nqhd,nkhd->nhqk", q_p, k_p)
    energy = jnp.where(mask == 0, jnp.float32(-1e20), energy)
    attn = jax.nn.softmax(energy / (embed_size ** 0.5), axis=3)
    out = jnp.einsum("nhql,nlhd->nqhd", attn, v_p).reshape(
        N, query_len, heads * head_dim)
    return out @ params["wo"].T + params["bo"]


# ----------------------------------------------------------------------------
def init_params(key, embed_size):
    ks = jax.random.split(key, 8)
    bound = 1.0 / (embed_size ** 0.5)

    def u(k, shape):
        return jax.random.uniform(k, shape, jnp.float32, -bound, bound)

    return {
        "wv": u(ks[0], (embed_size, embed_size)), "bv": u(ks[1], (embed_size,)),
        "wk": u(ks[2], (embed_size, embed_size)), "bk": u(ks[3], (embed_size,)),
        "wq": u(ks[4], (embed_size, embed_size)), "bq": u(ks[5], (embed_size,)),
        "wo": u(ks[6], (embed_size, embed_size)), "bo": u(ks[7], (embed_size,)),
    }


if __name__ == "__main__":
    N, seq_len, embed_size, heads = 2, 8, 32, 4

    root = jax.random.PRNGKey(0)
    k_param, k_v, k_k, k_q, k_m = jax.random.split(root, 5)

    params = init_params(k_param, embed_size)
    values = jax.random.normal(k_v, (N, seq_len, embed_size), jnp.float32)
    keys = jax.random.normal(k_k, (N, seq_len, embed_size), jnp.float32)
    query = jax.random.normal(k_q, (N, seq_len, embed_size), jnp.float32)
    # 0/1 mask broadcast over heads: (N, 1, q_len, k_len); 0 == masked out.
    mask = (jax.random.uniform(k_m, (N, 1, seq_len, seq_len)) > 0.2).astype(
        jnp.int32)
    # guarantee at least one visible key per query row (avoid all-masked rows)
    mask = mask.at[:, :, :, 0].set(1)

    out = self_attention_forward(params, values, keys, query, mask,
                                 heads=heads)
    out = jax.block_until_ready(out)

    ref = reference_forward(params, values, keys, query, mask, heads=heads)
    assert out.shape == (N, seq_len, embed_size)
    # tolerance slightly loosened vs f64-exact because of the approx (EUP)
    # reciprocal in the softmax denominator.
    assert jnp.allclose(out, ref, atol=5e-3, rtol=5e-3), (
        "Pallas output mismatch vs JAX reference")

    print("KERNEL_OK")
</pallas_src>

<mosaic_0001>
module attributes {stable_mosaic.version = 11 : i64} {
  func.func @fused_attention_kernel(%arg0: i32, %arg1: memref<1x8x32xf32, #tpu.memory_space<vmem>>, %arg2: memref<1x8x32xf32, #tpu.memory_space<vmem>>, %arg3: memref<1x8x32xf32, #tpu.memory_space<vmem>>, %arg4: memref<1x1x8x8xf32, #tpu.memory_space<vmem>>, %arg5: memref<32x32xf32, #tpu.memory_space<vmem>>, %arg6: memref<1x32xf32, #tpu.memory_space<vmem>>, %arg7: memref<32x32xf32, #tpu.memory_space<vmem>>, %arg8: memref<1x32xf32, #tpu.memory_space<vmem>>, %arg9: memref<32x32xf32, #tpu.memory_space<vmem>>, %arg10: memref<1x32xf32, #tpu.memory_space<vmem>>, %arg11: memref<32x32xf32, #tpu.memory_space<vmem>>, %arg12: memref<1x32xf32, #tpu.memory_space<vmem>>, %arg13: memref<1x8x32xf32, #tpu.memory_space<vmem>>) attributes {dimension_semantics = [#tpu.dimension_semantics<parallel>], iteration_bounds = array<i64: 2>, scalar_prefetch = 0 : i64, scratch_operands = 0 : i64, tpu.core_type = #tpu.core_type<tc>, window_params = [{transform_indices = @transform_0, window_bounds = array<i64: 1, 8, 32>}, {transform_indices = @transform_1, window_bounds = array<i64: 1, 8, 32>}, {transform_indices = @transform_2, window_bounds = array<i64: 1, 8, 32>}, {transform_indices = @transform_3, window_bounds = array<i64: 1, 1, 8, 8>}, {pipeline_mode = #tpu.pipeline_mode<synchronous>, transform_indices = @transform_4, window_bounds = array<i64: 32, 32>}, {pipeline_mode = #tpu.pipeline_mode<synchronous>, transform_indices = @transform_5, window_bounds = array<i64: 1, 32>}, {pipeline_mode = #tpu.pipeline_mode<synchronous>, transform_indices = @transform_6, window_bounds = array<i64: 32, 32>}, {pipeline_mode = #tpu.pipeline_mode<synchronous>, transform_indices = @transform_7, window_bounds = array<i64: 1, 32>}, {pipeline_mode = #tpu.pipeline_mode<synchronous>, transform_indices = @transform_8, window_bounds = array<i64: 32, 32>}, {pipeline_mode = #tpu.pipeline_mode<synchronous>, transform_indices = @transform_9, window_bounds = array<i64: 1, 32>}, {pipeline_mode = #tpu.pipeline_mode<synchronous>, transform_indices = @transform_10, window_bounds = array<i64: 32, 32>}, {pipeline_mode = #tpu.pipeline_mode<synchronous>, transform_indices = @transform_11, window_bounds = array<i64: 1, 32>}, {transform_indices = @transform_12, window_bounds = array<i64: 1, 8, 32>}]} {
    %c0 = arith.constant 0 : index
    %c0_0 = arith.constant 0 : index
    %c0_1 = arith.constant 0 : index
    %0 = vector.load %arg1[%c0, %c0_0, %c0_1] : memref<1x8x32xf32, #tpu.memory_space<vmem>>, vector<1x8x32xf32>
    %1 = vector.shape_cast %0 : vector<1x8x32xf32> to vector<8x32xf32>
    %c0_2 = arith.constant 0 : index
    %c0_3 = arith.constant 0 : index
    %c0_4 = arith.constant 0 : index
    %2 = vector.load %arg2[%c0_2, %c0_3, %c0_4] : memref<1x8x32xf32, #tpu.memory_space<vmem>>, vector<1x8x32xf32>
    %3 = vector.shape_cast %2 : vector<1x8x32xf32> to vector<8x32xf32>
    %c0_5 = arith.constant 0 : index
    %c0_6 = arith.constant 0 : index
    %c0_7 = arith.constant 0 : index
    %4 = vector.load %arg3[%c0_5, %c0_6, %c0_7] : memref<1x8x32xf32, #tpu.memory_space<vmem>>, vector<1x8x32xf32>
    %5 = vector.shape_cast %4 : vector<1x8x32xf32> to vector<8x32xf32>
    %c0_8 = arith.constant 0 : index
    %c0_9 = arith.constant 0 : index
    %c0_10 = arith.constant 0 : index
    %c0_11 = arith.constant 0 : index
    %6 = vector.load %arg4[%c0_8, %c0_9, %c0_10, %c0_11] : memref<1x1x8x8xf32, #tpu.memory_space<vmem>>, vector<1x1x8x8xf32>
    %7 = vector.shape_cast %6 : vector<1x1x8x8xf32> to vector<8x8xf32>
    %c0_12 = arith.constant 0 : index
    %c0_13 = arith.constant 0 : index
    %8 = vector.load %arg5[%c0_12, %c0_13] : memref<32x32xf32, #tpu.memory_space<vmem>>, vector<32x32xf32>
    %cst = arith.constant dense<0.000000e+00> : vector<8x32xf32>
    %9 = tpu.matmul %1, %8, %cst {dimension_numbers = #tpu.dot_dimension_numbers<[1], [1], [0], [0], [0, 0, 1, 0], [], []>} : vector<8x32xf32>, vector<32x32xf32>, vector<8x32xf32> -> vector<8x32xf32>
    %c0_14 = arith.constant 0 : index
    %c0_15 = arith.constant 0 : index
    %10 = vector.load %arg6[%c0_14, %c0_15] : memref<1x32xf32, #tpu.memory_space<vmem>>, vector<1x32xf32>
    %11 = vector.broadcast %10 : vector<1x32xf32> to vector<8x32xf32>
    %12 = arith.addf %9, %11 : vector<8x32xf32>
    %c0_16 = arith.constant 0 : index
    %c0_17 = arith.constant 0 : index
    %13 = vector.load %arg7[%c0_16, %c0_17] : memref<32x32xf32, #tpu.memory_space<vmem>>, vector<32x32xf32>
    %cst_18 = arith.constant dense<0.000000e+00> : vector<8x32xf32>
    %14 = tpu.matmul %3, %13, %cst_18 {dimension_numbers = #tpu.dot_dimension_numbers<[1], [1], [0], [0], [0, 0, 1, 0], [], []>} : vector<8x32xf32>, vector<32x32xf32>, vector<8x32xf32> -> vector<8x32xf32>
    %c0_19 = arith.constant 0 : index
    %c0_20 = arith.constant 0 : index
    %15 = vector.load %arg8[%c0_19, %c0_20] : memref<1x32xf32, #tpu.memory_space<vmem>>, vector<1x32xf32>
    %16 = vector.broadcast %15 : vector<1x32xf32> to vector<8x32xf32>
    %17 = arith.addf %14, %16 : vector<8x32xf32>
    %c0_21 = arith.constant 0 : index
    %c0_22 = arith.constant 0 : index
    %18 = vector.load %arg9[%c0_21, %c0_22] : memref<32x32xf32, #tpu.memory_space<vmem>>, vector<32x32xf32>
    %cst_23 = arith.constant dense<0.000000e+00> : vector<8x32xf32>
    %19 = tpu.matmul %5, %18, %cst_23 {dimension_numbers = #tpu.dot_dimension_numbers<[1], [1], [0], [0], [0, 0, 1, 0], [], []>} : vector<8x32xf32>, vector<32x32xf32>, vector<8x32xf32> -> vector<8x32xf32>
    %c0_24 = arith.constant 0 : index
    %c0_25 = arith.constant 0 : index
    %20 = vector.load %arg10[%c0_24, %c0_25] : memref<1x32xf32, #tpu.memory_space<vmem>>, vector<1x32xf32>
    %21 = vector.broadcast %20 : vector<1x32xf32> to vector<8x32xf32>
    %22 = arith.addf %19, %21 : vector<8x32xf32>
    %23 = vector.extract_strided_slice %12 {offsets = [0, 0], sizes = [8, 8], strides = [1, 1]} : vector<8x32xf32> to vector<8x8xf32>
    %24 = vector.extract_strided_slice %17 {offsets = [0, 0], sizes = [8, 8], strides = [1, 1]} : vector<8x32xf32> to vector<8x8xf32>
    %25 = vector.extract_strided_slice %22 {offsets = [0, 0], sizes = [8, 8], strides = [1, 1]} : vector<8x32xf32> to vector<8x8xf32>
    %cst_26 = arith.constant dense<0.000000e+00> : vector<8x8xf32>
    %26 = tpu.matmul %23, %24, %cst_26 {dimension_numbers = #tpu.dot_dimension_numbers<[1], [1], [0], [0], [0, 0, 1, 0], [], []>} : vector<8x8xf32>, vector<8x8xf32>, vector<8x8xf32> -> vector<8x8xf32>
    %27 = arith.addf %26, %7 : vector<8x8xf32>
    %cst_27 = arith.constant 0.176776692 : f32
    %28 = vector.broadcast %cst_27 : f32 to vector<8x8xf32>
    %29 = arith.mulf %27, %28 : vector<8x8xf32>
    %cst_28 = arith.constant dense<0xFF800000> : vector<8xf32>
    %30 = vector.multi_reduction <maximumf>, %29, %cst_28 [1] : vector<8x8xf32> to vector<8xf32>
    %31 = vector.shape_cast %30 : vector<8xf32> to vector<8x1xf32>
    %32 = vector.broadcast %31 : vector<8x1xf32> to vector<8x8xf32>
    %33 = arith.subf %29, %32 : vector<8x8xf32>
    %34 = math.exp %33 : vector<8x8xf32>
    %cst_29 = arith.constant dense<0.000000e+00> : vector<8xf32>
    %35 = vector.multi_reduction <add>, %34, %cst_29 [1] : vector<8x8xf32> to vector<8xf32>
    %36 = vector.shape_cast %35 : vector<8xf32> to vector<8x1xf32>
    %37 = tpu.reciprocal %36 {approx = true} : vector<8x1xf32> -> vector<8x1xf32>
    %38 = vector.broadcast %37 : vector<8x1xf32> to vector<8x8xf32>
    %39 = arith.mulf %34, %38 : vector<8x8xf32>
    %cst_30 = arith.constant dense<0.000000e+00> : vector<8x8xf32>
    %40 = tpu.matmul %39, %25, %cst_30 {dimension_numbers = #tpu.dot_dimension_numbers<[1], [0], [0], [1], [0, 0, 1, 1], [], []>} : vector<8x8xf32>, vector<8x8xf32>, vector<8x8xf32> -> vector<8x8xf32>
    %41 = vector.extract_strided_slice %12 {offsets = [0, 8], sizes = [8, 8], strides = [1, 1]} : vector<8x32xf32> to vector<8x8xf32>
    %42 = vector.extract_strided_slice %17 {offsets = [0, 8], sizes = [8, 8], strides = [1, 1]} : vector<8x32xf32> to vector<8x8xf32>
    %43 = vector.extract_strided_slice %22 {offsets = [0, 8], sizes = [8, 8], strides = [1, 1]} : vector<8x32xf32> to vector<8x8xf32>
    %cst_31 = arith.constant dense<0.000000e+00> : vector<8x8xf32>
    %44 = tpu.matmul %41, %42, %cst_31 {dimension_numbers = #tpu.dot_dimension_numbers<[1], [1], [0], [0], [0, 0, 1, 0], [], []>} : vector<8x8xf32>, vector<8x8xf32>, vector<8x8xf32> -> vector<8x8xf32>
    %45 = arith.addf %44, %7 : vector<8x8xf32>
    %cst_32 = arith.constant 0.176776692 : f32
    %46 = vector.broadcast %cst_32 : f32 to vector<8x8xf32>
    %47 = arith.mulf %45, %46 : vector<8x8xf32>
    %cst_33 = arith.constant dense<0xFF800000> : vector<8xf32>
    %48 = vector.multi_reduction <maximumf>, %47, %cst_33 [1] : vector<8x8xf32> to vector<8xf32>
    %49 = vector.shape_cast %48 : vector<8xf32> to vector<8x1xf32>
    %50 = vector.broadcast %49 : vector<8x1xf32> to vector<8x8xf32>
    %51 = arith.subf %47, %50 : vector<8x8xf32>
    %52 = math.exp %51 : vector<8x8xf32>
    %cst_34 = arith.constant dense<0.000000e+00> : vector<8xf32>
    %53 = vector.multi_reduction <add>, %52, %cst_34 [1] : vector<8x8xf32> to vector<8xf32>
    %54 = vector.shape_cast %53 : vector<8xf32> to vector<8x1xf32>
    %55 = tpu.reciprocal %54 {approx = true} : vector<8x1xf32> -> vector<8x1xf32>
    %56 = vector.broadcast %55 : vector<8x1xf32> to vector<8x8xf32>
    %57 = arith.mulf %52, %56 : vector<8x8xf32>
    %cst_35 = arith.constant dense<0.000000e+00> : vector<8x8xf32>
    %58 = tpu.matmul %57, %43, %cst_35 {dimension_numbers = #tpu.dot_dimension_numbers<[1], [0], [0], [1], [0, 0, 1, 1], [], []>} : vector<8x8xf32>, vector<8x8xf32>, vector<8x8xf32> -> vector<8x8xf32>
    %59 = vector.extract_strided_slice %12 {offsets = [0, 16], sizes = [8, 8], strides = [1, 1]} : vector<8x32xf32> to vector<8x8xf32>
    %60 = vector.extract_strided_slice %17 {offsets = [0, 16], sizes = [8, 8], strides = [1, 1]} : vector<8x32xf32> to vector<8x8xf32>
    %61 = vector.extract_strided_slice %22 {offsets = [0, 16], sizes = [8, 8], strides = [1, 1]} : vector<8x32xf32> to vector<8x8xf32>
    %cst_36 = arith.constant dense<0.000000e+00> : vector<8x8xf32>
    %62 = tpu.matmul %59, %60, %cst_36 {dimension_numbers = #tpu.dot_dimension_numbers<[1], [1], [0], [0], [0, 0, 1, 0], [], []>} : vector<8x8xf32>, vector<8x8xf32>, vector<8x8xf32> -> vector<8x8xf32>
    %63 = arith.addf %62, %7 : vector<8x8xf32>
    %cst_37 = arith.constant 0.176776692 : f32
    %64 = vector.broadcast %cst_37 : f32 to vector<8x8xf32>
    %65 = arith.mulf %63, %64 : vector<8x8xf32>
    %cst_38 = arith.constant dense<0xFF800000> : vector<8xf32>
    %66 = vector.multi_reduction <maximumf>, %65, %cst_38 [1] : vector<8x8xf32> to vector<8xf32>
    %67 = vector.shape_cast %66 : vector<8xf32> to vector<8x1xf32>
    %68 = vector.broadcast %67 : vector<8x1xf32> to vector<8x8xf32>
    %69 = arith.subf %65, %68 : vector<8x8xf32>
    %70 = math.exp %69 : vector<8x8xf32>
    %cst_39 = arith.constant dense<0.000000e+00> : vector<8xf32>
    %71 = vector.multi_reduction <add>, %70, %cst_39 [1] : vector<8x8xf32> to vector<8xf32>
    %72 = vector.shape_cast %71 : vector<8xf32> to vector<8x1xf32>
    %73 = tpu.reciprocal %72 {approx = true} : vector<8x1xf32> -> vector<8x1xf32>
    %74 = vector.broadcast %73 : vector<8x1xf32> to vector<8x8xf32>
    %75 = arith.mulf %70, %74 : vector<8x8xf32>
    %cst_40 = arith.constant dense<0.000000e+00> : vector<8x8xf32>
    %76 = tpu.matmul %75, %61, %cst_40 {dimension_numbers = #tpu.dot_dimension_numbers<[1], [0], [0], [1], [0, 0, 1, 1], [], []>} : vector<8x8xf32>, vector<8x8xf32>, vector<8x8xf32> -> vector<8x8xf32>
    %77 = vector.extract_strided_slice %12 {offsets = [0, 24], sizes = [8, 8], strides = [1, 1]} : vector<8x32xf32> to vector<8x8xf32>
    %78 = vector.extract_strided_slice %17 {offsets = [0, 24], sizes = [8, 8], strides = [1, 1]} : vector<8x32xf32> to vector<8x8xf32>
    %79 = vector.extract_strided_slice %22 {offsets = [0, 24], sizes = [8, 8], strides = [1, 1]} : vector<8x32xf32> to vector<8x8xf32>
    %cst_41 = arith.constant dense<0.000000e+00> : vector<8x8xf32>
    %80 = tpu.matmul %77, %78, %cst_41 {dimension_numbers = #tpu.dot_dimension_numbers<[1], [1], [0], [0], [0, 0, 1, 0], [], []>} : vector<8x8xf32>, vector<8x8xf32>, vector<8x8xf32> -> vector<8x8xf32>
    %81 = arith.addf %80, %7 : vector<8x8xf32>
    %cst_42 = arith.constant 0.176776692 : f32
    %82 = vector.broadcast %cst_42 : f32 to vector<8x8xf32>
    %83 = arith.mulf %81, %82 : vector<8x8xf32>
    %cst_43 = arith.constant dense<0xFF800000> : vector<8xf32>
    %84 = vector.multi_reduction <maximumf>, %83, %cst_43 [1] : vector<8x8xf32> to vector<8xf32>
    %85 = vector.shape_cast %84 : vector<8xf32> to vector<8x1xf32>
    %86 = vector.broadcast %85 : vector<8x1xf32> to vector<8x8xf32>
    %87 = arith.subf %83, %86 : vector<8x8xf32>
    %88 = math.exp %87 : vector<8x8xf32>
    %cst_44 = arith.constant dense<0.000000e+00> : vector<8xf32>
    %89 = vector.multi_reduction <add>, %88, %cst_44 [1] : vector<8x8xf32> to vector<8xf32>
    %90 = vector.shape_cast %89 : vector<8xf32> to vector<8x1xf32>
    %91 = tpu.reciprocal %90 {approx = true} : vector<8x1xf32> -> vector<8x1xf32>
    %92 = vector.broadcast %91 : vector<8x1xf32> to vector<8x8xf32>
    %93 = arith.mulf %88, %92 : vector<8x8xf32>
    %cst_45 = arith.constant dense<0.000000e+00> : vector<8x8xf32>
    %94 = tpu.matmul %93, %79, %cst_45 {dimension_numbers = #tpu.dot_dimension_numbers<[1], [0], [0], [1], [0, 0, 1, 1], [], []>} : vector<8x8xf32>, vector<8x8xf32>, vector<8x8xf32> -> vector<8x8xf32>
    %95 = tpu.concatenate %40, %58, %76, %94 in 1 : vector<8x8xf32>, vector<8x8xf32>, vector<8x8xf32>, vector<8x8xf32> -> vector<8x32xf32>
    %c0_46 = arith.constant 0 : index
    %c0_47 = arith.constant 0 : index
    %96 = vector.load %arg11[%c0_46, %c0_47] : memref<32x32xf32, #tpu.memory_space<vmem>>, vector<32x32xf32>
    %cst_48 = arith.constant dense<0.000000e+00> : vector<8x32xf32>
    %97 = tpu.matmul %95, %96, %cst_48 {dimension_numbers = #tpu.dot_dimension_numbers<[1], [1], [0], [0], [0, 0, 1, 0], [], []>} : vector<8x32xf32>, vector<32x32xf32>, vector<8x32xf32> -> vector<8x32xf32>
    %c0_49 = arith.constant 0 : index
    %c0_50 = arith.constant 0 : index
    %98 = vector.load %arg12[%c0_49, %c0_50] : memref<1x32xf32, #tpu.memory_space<vmem>>, vector<1x32xf32>
    %99 = vector.broadcast %98 : vector<1x32xf32> to vector<8x32xf32>
    %100 = arith.addf %97, %99 : vector<8x32xf32>
    %c0_51 = arith.constant 0 : index
    %c0_52 = arith.constant 0 : index
    %c0_53 = arith.constant 0 : index
    %101 = vector.load %arg13[%c0_51, %c0_52, %c0_53] : memref<1x8x32xf32, #tpu.memory_space<vmem>>, vector<1x8x32xf32>
    %102 = vector.shape_cast %101 : vector<1x8x32xf32> to vector<8x32xf32>
    %103 = vector.shape_cast %100 : vector<8x32xf32> to vector<1x8x32xf32>
    tpu.vector_store %arg13[%c0_51, %c0_52, %c0_53], %103 {strides = array<i32>} : memref<1x8x32xf32, #tpu.memory_space<vmem>>, vector<1x8x32xf32>,
    return
  }
  func.func @transform_0(%arg0: i32) -> (i32, i32, i32) {
    %c0_i32 = arith.constant 0 : i32
    %c0_i32_0 = arith.constant 0 : i32
    %c0_i32_1 = arith.constant 0 : i32
    return %arg0, %c0_i32, %c0_i32_0 : i32, i32, i32
  }
  func.func @transform_1(%arg0: i32) -> (i32, i32, i32) {
    %c0_i32 = arith.constant 0 : i32
    %c0_i32_0 = arith.constant 0 : i32
    %c0_i32_1 = arith.constant 0 : i32
    return %arg0, %c0_i32, %c0_i32_0 : i32, i32, i32
  }
  func.func @transform_2(%arg0: i32) -> (i32, i32, i32) {
    %c0_i32 = arith.constant 0 : i32
    %c0_i32_0 = arith.constant 0 : i32
    %c0_i32_1 = arith.constant 0 : i32
    return %arg0, %c0_i32, %c0_i32_0 : i32, i32, i32
  }
  func.func @transform_3(%arg0: i32) -> (i32, i32, i32, i32) {
    %c0_i32 = arith.constant 0 : i32
    %c0_i32_0 = arith.constant 0 : i32
    %c0_i32_1 = arith.constant 0 : i32
    %c0_i32_2 = arith.constant 0 : i32
    return %arg0, %c0_i32, %c0_i32_0, %c0_i32_1 : i32, i32, i32, i32
  }
  func.func @transform_4(%arg0: i32) -> (i32, i32) {
    %c0_i32 = arith.constant 0 : i32
    %c0_i32_0 = arith.constant 0 : i32
    %c0_i32_1 = arith.constant 0 : i32
    return %c0_i32, %c0_i32_0 : i32, i32
  }
  func.func @transform_5(%arg0: i32) -> (i32, i32) {
    %c0_i32 = arith.constant 0 : i32
    %c0_i32_0 = arith.constant 0 : i32
    %c0_i32_1 = arith.constant 0 : i32
    return %c0_i32, %c0_i32_0 : i32, i32
  }
  func.func @transform_6(%arg0: i32) -> (i32, i32) {
    %c0_i32 = arith.constant 0 : i32
    %c0_i32_0 = arith.constant 0 : i32
    %c0_i32_1 = arith.constant 0 : i32
    return %c0_i32, %c0_i32_0 : i32, i32
  }
  func.func @transform_7(%arg0: i32) -> (i32, i32) {
    %c0_i32 = arith.constant 0 : i32
    %c0_i32_0 = arith.constant 0 : i32
    %c0_i32_1 = arith.constant 0 : i32
    return %c0_i32, %c0_i32_0 : i32, i32
  }
  func.func @transform_8(%arg0: i32) -> (i32, i32) {
    %c0_i32 = arith.constant 0 : i32
    %c0_i32_0 = arith.constant 0 : i32
    %c0_i32_1 = arith.constant 0 : i32
    return %c0_i32, %c0_i32_0 : i32, i32
  }
  func.func @transform_9(%arg0: i32) -> (i32, i32) {
    %c0_i32 = arith.constant 0 : i32
    %c0_i32_0 = arith.constant 0 : i32
    %c0_i32_1 = arith.constant 0 : i32
    return %c0_i32, %c0_i32_0 : i32, i32
  }
  func.func @transform_10(%arg0: i32) -> (i32, i32) {
    %c0_i32 = arith.constant 0 : i32
    %c0_i32_0 = arith.constant 0 : i32
    %c0_i32_1 = arith.constant 0 : i32
    return %c0_i32, %c0_i32_0 : i32, i32
  }
  func.func @transform_11(%arg0: i32) -> (i32, i32) {
    %c0_i32 = arith.constant 0 : i32
    %c0_i32_0 = arith.constant 0 : i32
    %c0_i32_1 = arith.constant 0 : i32
    return %c0_i32, %c0_i32_0 : i32, i32
  }
  func.func @transform_12(%arg0: i32) -> (i32, i32, i32) {
    %c0_i32 = arith.constant 0 : i32
    %c0_i32_0 = arith.constant 0 : i32
    %c0_i32_1 = arith.constant 0 : i32
    return %arg0, %c0_i32, %c0_i32_0 : i32, i32, i32
  }
}

</mosaic_0001>

<llo_original>
// kernel: _self_attention_forward.1
$region0: #{_self_attention_forward.1}
  #allocation0 [shape = 'u32[]', space=smem, size = 0x4, offset = 0x4, fixed_abs, tag = 'smem constant byte address 0x4 - core index']
  #allocation1 [shape = 'u32[144,128]{1,0:T(1,128)}', space=vmem, size = 0x12000, scoped, tag = 'internal scratch']
  %s0 = inlined_call_operand.hbm [shape: f32[2,8,32], index: 0, kind: input, shape index: {}]
  %s1 = inlined_call_operand.hbm [shape: f32[2,8,32], index: 1, kind: input, shape index: {}]
  %s2 = inlined_call_operand.hbm [shape: f32[2,8,32], index: 2, kind: input, shape index: {}]
  %s3 = inlined_call_operand.vmem [shape: f32[2,1,8,8], index: 3, kind: input, shape index: {}]
  %s4 = inlined_call_operand.vmem [shape: f32[32,32], index: 4, kind: input, shape index: {}]
  %s5 = inlined_call_operand.vmem [shape: f32[1,32], index: 5, kind: input, shape index: {}]
  %s6 = inlined_call_operand.hbm [shape: f32[32,32], index: 6, kind: input, shape index: {}]
  %s7 = inlined_call_operand.vmem [shape: f32[1,32], index: 7, kind: input, shape index: {}]
  %s8 = inlined_call_operand.hbm [shape: f32[32,32], index: 8, kind: input, shape index: {}]
  %s9 = inlined_call_operand.vmem [shape: f32[1,32], index: 9, kind: input, shape index: {}]
  %s10 = inlined_call_operand.hbm [shape: f32[32,32], index: 10, kind: input, shape index: {}]
  %s11 = inlined_call_operand.vmem [shape: f32[1,32], index: 11, kind: input, shape index: {}]
  %s12 = inlined_call_operand.hbm [shape: f32[2,8,32], index: 12, kind: output, shape index: {}]
  %s13 = sld [smem:[#allocation0]]
  $region105: #{_self_attention_forward.1} parent=0
    _
  %s15 = ssub.s32 1, %s13
  %s16 = scalar_select 0, %s15, %s13
  $region1: #{_self_attention_forward.1} parent=0
    #allocation2 [shape = 'u8[8192]{0}', space=vmem, size = 0x2000, scoped, tag = 'input window, operand 0']
    #allocation3 [shape = 's32[2]{0}', space=sflag, size = 0x8, scoped, tag = 'scoped memory for _self_attention_forward.1']
    #allocation4 [shape = 's32[2]{0}', space=sflag, size = 0x8, scoped, tag = 'scoped memory for _self_attention_forward.1']
    #allocation5 [shape = 'u8[8192]{0}', space=vmem, size = 0x2000, scoped, tag = 'input window, operand 1']
    #allocation6 [shape = 's32[2]{0}', space=sflag, size = 0x8, scoped, tag = 'scoped memory for _self_attention_forward.1']
    #allocation7 [shape = 'u8[8192]{0}', space=vmem, size = 0x2000, scoped, tag = 'input window, operand 2']
    #allocation8 [shape = 'u8[16384]{0}', space=vmem, size = 0x4000, scoped, tag = 'input window, operand 6, single buffered']
    #allocation9 [shape = 's32[1]{0}', space=sflag, size = 0x4, scoped, tag = 'scoped memory for _self_attention_forward.1']
    #allocation10 [shape = 'u8[16384]{0}', space=vmem, size = 0x4000, scoped, tag = 'input window, operand 8, single buffered']
    #allocation11 [shape = 'u8[16384]{0}', space=vmem, size = 0x4000, scoped, tag = 'input window, operand 10, single buffered']
    #allocation12 [shape = 's32[1]{0}', space=sflag, size = 0x4, scoped, tag = 'scoped memory for _self_attention_forward.1']
    #allocation13 [shape = 'u8[8192]{0}', space=vmem, size = 0x2000, scoped, tag = 'output window, operand 0']
    %17 = vsyncpa [#allocation3], 0
    %s18 = scalar_lea.sflag [#allocation3], 1
    %19 = vsyncpa %s18, 0
    %20 = vsyncpa [#allocation6], 0
    %s21 = scalar_lea.sflag [#allocation6], 1
    %22 = vsyncpa %s21, 0
    %23 = vsyncpa [#allocation9], 0
    %24 = vsyncpa [#allocation12], 0
    %25 = vsyncpa [#allocation4], 0
    %s26 = scalar_lea.sflag [#allocation4], 1
    %27 = vsyncpa %s26, 0
    loop: start=0, step=1, limit=4
    $region2: #{_self_attention_forward.1} parent=1 // loop_pre_header
      _
    $region3: #{_self_attention_forward.1} parent=1 // loop_header
      %s29 = sphi 0, %s33
      %p30 = scmp.ge.s32.totalorder %s29, 4
      %s39 = sphi 0, %s41
      %s42 = sphi 0, %s39
      %s43 = sphi 0, %s42
      %s59 = sphi 0, %s43
      %s65 = sphi 0, %s67
      %s68 = sphi 0, %s65
      %s69 = sphi 0, %s68
      %s85 = sphi 0, %s69
      %s91 = sphi 0, %s93
      %s94 = sphi 0, %s91
      %s95 = sphi 0, %s94
      %s111 = sphi 0, %s95
      %s117 = sphi 0, %s119
      %s120 = sphi 0, %s117
      %s121 = sphi 0, %s120
      %s137 = sphi 0, %s121
      %s141 = sphi 0, %s141
      %s143 = sphi 0, %s141
      %s144 = sphi 0, %s143
      %s158 = sphi 0, %s144
      %s162 = sphi 0, %s162
      %s164 = sphi 0, %s162
      %s165 = sphi 0, %s164
      %s179 = sphi 0, %s165
      %s183 = sphi 0, %s183
      %s185 = sphi 0, %s183
      %s186 = sphi 0, %s185
      %s200 = sphi 0, %s186
      %s204 = sphi 0, %s204
      %s206 = sphi 0, %s204
      %s207 = sphi 0, %s206
      %s221 = sphi 0, %s207
      %s225 = sphi 0, %s225
      %s227 = sphi 0, %s225
      %s228 = sphi 0, %s227
      %s242 = sphi 0, %s228
      %s246 = sphi 0, %s246
      %s248 = sphi 0, %s246
      %s249 = sphi 0, %s248
      %s263 = sphi 0, %s249
      %s267 = sphi 0, %s267
      %s269 = sphi 0, %s267
      %s270 = sphi 0, %s269
      %s284 = sphi 0, %s270
      %s288 = sphi 0, %s288
      %s290 = sphi 0, %s288
      %s291 = sphi 0, %s290
      %s305 = sphi 0, %s291
      %s311 = sphi 0, %s313
      %s314 = sphi 0, %s311
      %s315 = sphi 0, %s314
      %s331 = sphi 0, %s315
    $region4: #{_self_attention_forward.1} parent=1 // loop_header_branch
      %32 = sbr.rel (%p30) target = $region8
    $region5: #{_self_attention_forward.1} parent=1 // loop_body
      %s34 = ssub.s32 %s29, 1
      %s35 = ssub.s32 %s29, 2
      %s36 = sadd.s32 %s29, 1
      %s37 = ssub.s32 %s29, %s36
      %p38 = scmp.eq.s32.totalorder %s37, 0
      %s40 = sadd.s32 %s39, 1
      %s41 = scalar_select %p38, %s39, %s40
      %p44 = pneg %p38
      %p45 = scmp.eq.s32.totalorder %s29, 1
      %p46 = por %p44, %p45
      %p47 = scmp.ne.s32.totalorder %s39, %s42
      %p48 = scmp.eq.s32.totalorder %s29, 0
      %p49 = por %p47, %p48
      %p50 = scmp.ne.s32.totalorder %s39, %s42
      %p51 = scmp.eq.s32.totalorder %s34, 1
      %p52 = por %p50, %p51
      %p53 = scmp.ne.s32.totalorder %s42, %s43
      %p54 = scmp.eq.s32.totalorder %s34, 0
      %p55 = por %p53, %p54
      %p56 = scmp.ne.s32.totalorder %s42, %s43
      %p57 = scmp.eq.s32.totalorder %s35, 1
      %p58 = por %p56, %p57
      %p60 = scmp.ne.s32.totalorder %s43, %s59
      %p61 = scmp.eq.s32.totalorder %s35, 0
      %p62 = por %p60, %p61
      %s63 = ssub.s32 %s29, %s36
      %p64 = scmp.eq.s32.totalorder %s63, 0
      %s66 = sadd.s32 %s65, 1
      %s67 = scalar_select %p64, %s65, %s66
      %p70 = pneg %p64
      %p71 = scmp.eq.s32.totalorder %s29, 1
      %p72 = por %p70, %p71
      %p73 = scmp.ne.s32.totalorder %s65, %s68
      %p74 = scmp.eq.s32.totalorder %s29, 0
      %p75 = por %p73, %p74
      %p76 = scmp.ne.s32.totalorder %s65, %s68
      %p77 = scmp.eq.s32.totalorder %s34, 1
      %p78 = por %p76, %p77
      %p79 = scmp.ne.s32.totalorder %s68, %s69
      %p80 = scmp.eq.s32.totalorder %s34, 0
      %p81 = por %p79, %p80
      %p82 = scmp.ne.s32.totalorder %s68, %s69
      %p83 = scmp.eq.s32.totalorder %s35, 1
      %p84 = por %p82, %p83
      %p86 = scmp.ne.s32.totalorder %s69, %s85
      %p87 = scmp.eq.s32.totalorder %s35, 0
      %p88 = por %p86, %p87
      %s89 = ssub.s32 %s29, %s36
      %p90 = scmp.eq.s32.totalorder %s89, 0
      %s92 = sadd.s32 %s91, 1
      %s93 = scalar_select %p90, %s91, %s92
      %p96 = pneg %p90
      %p97 = scmp.eq.s32.totalorder %s29, 1
      %p98 = por %p96, %p97
      %p99 = scmp.ne.s32.totalorder %s91, %s94
      %p100 = scmp.eq.s32.totalorder %s29, 0
      %p101 = por %p99, %p100
      %p102 = scmp.ne.s32.totalorder %s91, %s94
      %p103 = scmp.eq.s32.totalorder %s34, 1
      %p104 = por %p102, %p103
      %p105 = scmp.ne.s32.totalorder %s94, %s95
      %p106 = scmp.eq.s32.totalorder %s34, 0
      %p107 = por %p105, %p106
      %p108 = scmp.ne.s32.totalorder %s94, %s95
      %p109 = scmp.eq.s32.totalorder %s35, 1
      %p110 = por %p108, %p109
      %p112 = scmp.ne.s32.totalorder %s95, %s111
      %p113 = scmp.eq.s32.totalorder %s35, 0
      %p114 = por %p112, %p113
      %s115 = ssub.s32 %s29, %s36
      %p116 = scmp.eq.s32.totalorder %s115, 0
      %s118 = sadd.s32 %s117, 1
      %s119 = scalar_select %p116, %s117, %s118
      %p122 = pneg %p116
      %p123 = scmp.eq.s32.totalorder %s29, 1
      %p124 = por %p122, %p123
      %p125 = scmp.ne.s32.totalorder %s117, %s120
      %p126 = scmp.eq.s32.totalorder %s29, 0
      %p127 = por %p125, %p126
      %p128 = scmp.ne.s32.totalorder %s117, %s120
      %p129 = scmp.eq.s32.totalorder %s34, 1
      %p130 = por %p128, %p129
      %p131 = scmp.ne.s32.totalorder %s120, %s121
      %p132 = scmp.eq.s32.totalorder %s34, 0
      %p133 = por %p131, %p132
      %p134 = scmp.ne.s32.totalorder %s120, %s121
      %p135 = scmp.eq.s32.totalorder %s35, 1
      %p136 = por %p134, %p135
      %p138 = scmp.ne.s32.totalorder %s121, %s137
      %p139 = scmp.eq.s32.totalorder %s35, 0
      %p140 = por %p138, %p139
      %s142 = sadd.s32 %s141, 1
      %p145 = scmp.eq.s32.totalorder %s29, 1
      %p146 = scmp.ne.s32.totalorder %s141, %s143
      %p147 = scmp.eq.s32.totalorder %s29, 0
      %p148 = por %p146, %p147
      %p149 = scmp.ne.s32.totalorder %s141, %s143
      %p150 = scmp.eq.s32.totalorder %s34, 1
      %p151 = por %p149, %p150
      %p152 = scmp.ne.s32.totalorder %s143, %s144
      %p153 = scmp.eq.s32.totalorder %s34, 0
      %p154 = por %p152, %p153
      %p155 = scmp.ne.s32.totalorder %s143, %s144
      %p156 = scmp.eq.s32.totalorder %s35, 1
      %p157 = por %p155, %p156
      %p159 = scmp.ne.s32.totalorder %s144, %s158
      %p160 = scmp.eq.s32.totalorder %s35, 0
      %p161 = por %p159, %p160
      %s163 = sadd.s32 %s162, 1
      %p166 = scmp.eq.s32.totalorder %s29, 1
      %p167 = scmp.ne.s32.totalorder %s162, %s164
      %p168 = scmp.eq.s32.totalorder %s29, 0
      %p169 = por %p167, %p168
      %p170 = scmp.ne.s32.totalorder %s162, %s164
      %p171 = scmp.eq.s32.totalorder %s34, 1
      %p172 = por %p170, %p171
      %p173 = scmp.ne.s32.totalorder %s164, %s165
      %p174 = scmp.eq.s32.totalorder %s34, 0
      %p175 = por %p173, %p174
      %p176 = scmp.ne.s32.totalorder %s164, %s165
      %p177 = scmp.eq.s32.totalorder %s35, 1
      %p178 = por %p176, %p177
      %p180 = scmp.ne.s32.totalorder %s165, %s179
      %p181 = scmp.eq.s32.totalorder %s35, 0
      %p182 = por %p180, %p181
      %s184 = sadd.s32 %s183, 1
      %p187 = scmp.eq.s32.totalorder %s29, 1
      %p188 = scmp.ne.s32.totalorder %s183, %s185
      %p189 = scmp.eq.s32.totalorder %s29, 0
      %p190 = por %p188, %p189
      %p191 = scmp.ne.s32.totalorder %s183, %s185
      %p192 = scmp.eq.s32.totalorder %s34, 1
      %p193 = por %p191, %p192
      %p194 = scmp.ne.s32.totalorder %s185, %s186
      %p195 = scmp.eq.s32.totalorder %s34, 0
      %p196 = por %p194, %p195
      %p197 = scmp.ne.s32.totalorder %s185, %s186
      %p198 = scmp.eq.s32.totalorder %s35, 1
      %p199 = por %p197, %p198
      %p201 = scmp.ne.s32.totalorder %s186, %s200
      %p202 = scmp.eq.s32.totalorder %s35, 0
      %p203 = por %p201, %p202
      %s205 = sadd.s32 %s204, 1
      %p208 = scmp.eq.s32.totalorder %s29, 1
      %p209 = scmp.ne.s32.totalorder %s204, %s206
      %p210 = scmp.eq.s32.totalorder %s29, 0
      %p211 = por %p209, %p210
      %p212 = scmp.ne.s32.totalorder %s204, %s206
      %p213 = scmp.eq.s32.totalorder %s34, 1
      %p214 = por %p212, %p213
      %p215 = scmp.ne.s32.totalorder %s206, %s207
      %p216 = scmp.eq.s32.totalorder %s34, 0
      %p217 = por %p215, %p216
      %p218 = scmp.ne.s32.totalorder %s206, %s207
      %p219 = scmp.eq.s32.totalorder %s35, 1
      %p220 = por %p218, %p219
      %p222 = scmp.ne.s32.totalorder %s207, %s221
      %p223 = scmp.eq.s32.totalorder %s35, 0
      %p224 = por %p222, %p223
      %s226 = sadd.s32 %s225, 1
      %p229 = scmp.eq.s32.totalorder %s29, 1
      %p230 = scmp.ne.s32.totalorder %s225, %s227
      %p231 = scmp.eq.s32.totalorder %s29, 0
      %p232 = por %p230, %p231
      %p233 = scmp.ne.s32.totalorder %s225, %s227
      %p234 = scmp.eq.s32.totalorder %s34, 1
      %p235 = por %p233, %p234
      %p236 = scmp.ne.s32.totalorder %s227, %s228
      %p237 = scmp.eq.s32.totalorder %s34, 0
      %p238 = por %p236, %p237
      %p239 = scmp.ne.s32.totalorder %s227, %s228
      %p240 = scmp.eq.s32.totalorder %s35, 1
      %p241 = por %p239, %p240
      %p243 = scmp.ne.s32.totalorder %s228, %s242
      %p244 = scmp.eq.s32.totalorder %s35, 0
      %p245 = por %p243, %p244
      %s247 = sadd.s32 %s246, 1
      %p250 = scmp.eq.s32.totalorder %s29, 1
      %p251 = scmp.ne.s32.totalorder %s246, %s248
      %p252 = scmp.eq.s32.totalorder %s29, 0
      %p253 = por %p251, %p252
      %p254 = scmp.ne.s32.totalorder %s246, %s248
      %p255 = scmp.eq.s32.totalorder %s34, 1
      %p256 = por %p254, %p255
      %p257 = scmp.ne.s32.totalorder %s248, %s249
      %p258 = scmp.eq.s32.totalorder %s34, 0
      %p259 = por %p257, %p258
      %p260 = scmp.ne.s32.totalorder %s248, %s249
      %p261 = scmp.eq.s32.totalorder %s35, 1
      %p262 = por %p260, %p261
      %p264 = scmp.ne.s32.totalorder %s249, %s263
      %p265 = scmp.eq.s32.totalorder %s35, 0
      %p266 = por %p264, %p265
      %s268 = sadd.s32 %s267, 1
      %p271 = scmp.eq.s32.totalorder %s29, 1
      %p272 = scmp.ne.s32.totalorder %s267, %s269
      %p273 = scmp.eq.s32.totalorder %s29, 0
      %p274 = por %p272, %p273
      %p275 = scmp.ne.s32.totalorder %s267, %s269
      %p276 = scmp.eq.s32.totalorder %s34, 1
      %p277 = por %p275, %p276
      %p278 = scmp.ne.s32.totalorder %s269, %s270
      %p279 = scmp.eq.s32.totalorder %s34, 0
      %p280 = por %p278, %p279
      %p281 = scmp.ne.s32.totalorder %s269, %s270
      %p282 = scmp.eq.s32.totalorder %s35, 1
      %p283 = por %p281, %p282
      %p285 = scmp.ne.s32.totalorder %s270, %s284
      %p286 = scmp.eq.s32.totalorder %s35, 0
      %p287 = por %p285, %p286
      %s289 = sadd.s32 %s288, 1
      %p292 = scmp.eq.s32.totalorder %s29, 1
      %p293 = scmp.ne.s32.totalorder %s288, %s290
      %p294 = scmp.eq.s32.totalorder %s29, 0
      %p295 = por %p293, %p294
      %p296 = scmp.ne.s32.totalorder %s288, %s290
      %p297 = scmp.eq.s32.totalorder %s34, 1
      %p298 = por %p296, %p297
      %p299 = scmp.ne.s32.totalorder %s290, %s291
      %p300 = scmp.eq.s32.totalorder %s34, 0
      %p301 = por %p299, %p300
      %p302 = scmp.ne.s32.totalorder %s290, %s291
      %p303 = scmp.eq.s32.totalorder %s35, 1
      %p304 = por %p302, %p303
      %p306 = scmp.ne.s32.totalorder %s291, %s305
      %p307 = scmp.eq.s32.totalorder %s35, 0
      %p308 = por %p306, %p307
      %s309 = ssub.s32 %s29, %s36
      %p310 = scmp.eq.s32.totalorder %s309, 0
      %s312 = sadd.s32 %s311, 1
      %s313 = scalar_select %p310, %s311, %s312
      %p316 = pneg %p310
      %p317 = scmp.eq.s32.totalorder %s29, 1
      %p318 = por %p316, %p317
      %p319 = scmp.ne.s32.totalorder %s311, %s314
      %p320 = scmp.eq.s32.totalorder %s29, 0
      %p321 = por %p319, %p320
      %p322 = scmp.ne.s32.totalorder %s311, %s314
      %p323 = scmp.eq.s32.totalorder %s34, 1
      %p324 = por %p322, %p323
      %p325 = scmp.ne.s32.totalorder %s314, %s315
      %p326 = scmp.eq.s32.totalorder %s34, 0
      %p327 = por %p325, %p326
      %p328 = scmp.ne.s32.totalorder %s314, %s315
      %p329 = scmp.eq.s32.totalorder %s35, 1
      %p330 = por %p328, %p329
      %p332 = scmp.ne.s32.totalorder %s315, %s331
      %p333 = scmp.eq.s32.totalorder %s35, 0
      %p334 = por %p332, %p333
      %p335 = scmp.le.s32.totalorder 1, %s29
      %p336 = scmp.lt.s32.totalorder %s29, 3
      %p337 = pnand %p335, %p336
      %p338 = pneg %p337
      // Predicated region
      $region9: #{_self_attention_forward.1} parent=5 // pred_check
        _
      $region10: #{_self_attention_forward.1} parent=5 // pred_check_branch
        %340 = sbr.rel (%p337) target = $region12
      $region11: #{_self_attention_forward.1} parent=5 // pred_region
        %s341 = ssub.s32 %s29, 1
        // Predicated region
        $region13: #{_self_attention_forward.1} parent=11 // pred_check
          %p342 = pneg %p154
        $region14: #{_self_attention_forward.1} parent=11 // pred_check_branch
          %344 = sbr.rel (%p342) target = $region16
        $region15: #{_self_attention_forward.1} parent=11 // pred_region
          _
        $region16: #{_self_attention_forward.1} parent=11 // pred_fallthru
          _
        // Predicated region
        $region17: #{_self_attention_forward.1} parent=11 // pred_check
          %p345 = pneg %p175
        $region18: #{_self_attention_forward.1} parent=11 // pred_check_branch
          %347 = sbr.rel (%p345) target = $region20
        $region19: #{_self_attention_forward.1} parent=11 // pred_region
          _
        $region20: #{_self_attention_forward.1} parent=11 // pred_fallthru
          _
        // Predicated region
        $region21: #{_self_attention_forward.1} parent=11 // pred_check
          %p348 = pneg %p196
        $region22: #{_self_attention_forward.1} parent=11 // pred_check_branch
          %350 = sbr.rel (%p348) target = $region24
        $region23: #{_self_attention_forward.1} parent=11 // pred_region
          %s352 = ssub.s32 512, 512
          %353 = vsyncadd [#allocation9], %s352
          %s354 = sshll.u32 [#allocation8], 4
          %s355 = int_to_ptr.vmem [resolvable:$true] %s354
          %360 = dma.hbm_to_vmem [thread:$0]  %s6, 512, %s355, [#allocation9], 128, 128, 8
        $region24: #{_self_attention_forward.1} parent=11 // pred_fallthru
          _
        // Predicated region
        $region25: #{_self_attention_forward.1} parent=11 // pred_check
          %p361 = pneg %p217
        $region26: #{_self_attention_forward.1} parent=11 // pred_check_branch
          %363 = sbr.rel (%p361) target = $region28
        $region27: #{_self_attention_forward.1} parent=11 // pred_region
          _
        $region28: #{_self_attention_forward.1} parent=11 // pred_fallthru
          _
        // Predicated region
        $region29: #{_self_attention_forward.1} parent=11 // pred_check
          %p364 = pneg %p238
        $region30: #{_self_attention_forward.1} parent=11 // pred_check_branch
          %366 = sbr.rel (%p364) target = $region32
        $region31: #{_self_attention_forward.1} parent=11 // pred_region
          %s368 = ssub.s32 512, 512
          %369 = vsyncadd [#allocation9], %s368
          %s370 = sshll.u32 [#allocation10], 4
          %s371 = int_to_ptr.vmem [resolvable:$true] %s370
          %376 = dma.hbm_to_vmem [thread:$0]  %s8, 512, %s371, [#allocation9], 128, 128, 8
        $region32: #{_self_attention_forward.1} parent=11 // pred_fallthru
          _
        // Predicated region
        $region33: #{_self_attention_forward.1} parent=11 // pred_check
          %p377 = pneg %p259
        $region34: #{_self_attention_forward.1} parent=11 // pred_check_branch
          %379 = sbr.rel (%p377) target = $region36
        $region35: #{_self_attention_forward.1} parent=11 // pred_region
          _
        $region36: #{_self_attention_forward.1} parent=11 // pred_fallthru
          _
        // Predicated region
        $region37: #{_self_attention_forward.1} parent=11 // pred_check
          %p380 = pneg %p280
        $region38: #{_self_attention_forward.1} parent=11 // pred_check_branch
          %382 = sbr.rel (%p380) target = $region40
        $region39: #{_self_attention_forward.1} parent=11 // pred_region
          %s384 = ssub.s32 512, 512
          %385 = vsyncadd [#allocation12], %s384
          %s386 = sshll.u32 [#allocation11], 4
          %s387 = int_to_ptr.vmem [resolvable:$true] %s386
          %392 = dma.hbm_to_vmem [thread:$0]  %s10, 512, %s387, [#allocation12], 128, 128, 8
        $region40: #{_self_attention_forward.1} parent=11 // pred_fallthru
          _
        // Predicated region
        $region41: #{_self_attention_forward.1} parent=11 // pred_check
          %p393 = pneg %p301
        $region42: #{_self_attention_forward.1} parent=11 // pred_check_branch
          %395 = sbr.rel (%p393) target = $region44
        $region43: #{_self_attention_forward.1} parent=11 // pred_region
          _
        $region44: #{_self_attention_forward.1} parent=11 // pred_fallthru
          _
      $region12: #{_self_attention_forward.1} parent=5 // pred_fallthru
        _
      %p396 = scmp.lt.s32.totalorder %s29, 2
      // Predicated region
      $region45: #{_self_attention_forward.1} parent=5 // pred_check
        %p397 = pneg %p396
      $region46: #{_self_attention_forward.1} parent=5 // pred_check_branch
        %399 = sbr.rel (%p397) target = $region48
      $region47: #{_self_attention_forward.1} parent=5 // pred_region
        // Predicated region
        $region49: #{_self_attention_forward.1} parent=47 // pred_check
          %p400 = pneg %p49
        $region50: #{_self_attention_forward.1} parent=47 // pred_check_branch
          %402 = sbr.rel (%p400) target = $region52
        $region51: #{_self_attention_forward.1} parent=47 // pred_region
          %s403 = sand.u32 %s39, 1
          %s404 = scalar_lea.sflag [#allocation3], %s403
          %s405 = sand.u32 %s39, 1
          %s406 = smul.addr %s405, 8
          %s407 = scalar_lea.vmem [#allocation2], %s406
          %s409 = ssub.s32 128, 128
          %410 = vsyncadd %s404, %s409
          %s411 = smul.addr %s29, 128
          %s412 = scalar_lea.hbm %s0, %s411
          %s414 = sshll.u32 %s407, 4
          %s415 = int_to_ptr.vmem [resolvable:$true] %s414
          %417 = dma.hbm_to_vmem [thread:$0]  %s412, 128, %s415, %s404
        $region52: #{_self_attention_forward.1} parent=47 // pred_fallthru
          _
        // Predicated region
        $region53: #{_self_attention_forward.1} parent=47 // pred_check
          %p418 = pneg %p75
        $region54: #{_self_attention_forward.1} parent=47 // pred_check_branch
          %420 = sbr.rel (%p418) target = $region56
        $region55: #{_self_attention_forward.1} parent=47 // pred_region
          %s421 = sand.u32 %s29, 1
          %s422 = scalar_lea.sflag [#allocation6], %s421
          %s423 = sand.u32 %s65, 1
          %s424 = smul.addr %s423, 8
          %s425 = scalar_lea.vmem [#allocation5], %s424
          %s427 = ssub.s32 128, 128
          %428 = vsyncadd %s422, %s427
          %s429 = smul.addr %s29, 128
          %s430 = scalar_lea.hbm %s1, %s429
          %s432 = sshll.u32 %s425, 4
          %s433 = int_to_ptr.vmem [resolvable:$true] %s432
          %435 = dma.hbm_to_vmem [thread:$0]  %s430, 128, %s433, %s422
        $region56: #{_self_attention_forward.1} parent=47 // pred_fallthru
          _
        // Predicated region
        $region57: #{_self_attention_forward.1} parent=47 // pred_check
          %p436 = pneg %p101
        $region58: #{_self_attention_forward.1} parent=47 // pred_check_branch
          %438 = sbr.rel (%p436) target = $region60
        $region59: #{_self_attention_forward.1} parent=47 // pred_region
          %s439 = sand.u32 %s29, 1
          %s440 = scalar_lea.sflag [#allocation6], %s439
          %s441 = sand.u32 %s91, 1
          %s442 = smul.addr %s441, 8
          %s443 = scalar_lea.vmem [#allocation7], %s442
          %s445 = ssub.s32 128, 128
          %446 = vsyncadd %s440, %s445
          %s447 = smul.addr %s29, 128
          %s448 = scalar_lea.hbm %s2, %s447
          %s450 = sshll.u32 %s443, 4
          %s451 = int_to_ptr.vmem [resolvable:$true] %s450
          %453 = dma.hbm_to_vmem [thread:$0]  %s448, 128, %s451, %s440
        $region60: #{_self_attention_forward.1} parent=47 // pred_fallthru
          _
        // Predicated region
        $region61: #{_self_attention_forward.1} parent=47 // pred_check
          %p454 = pneg %p127
        $region62: #{_self_attention_forward.1} parent=47 // pred_check_branch
          %456 = sbr.rel (%p454) target = $region64
        $region63: #{_self_attention_forward.1} parent=47 // pred_region
          %p457 = scmp.lt.s32.totalorder %s29, 1
          %s458 = scalar_select %p457, %s29, 1
          %s459 = smul.addr %s458, 8
          %s460 = scalar_lea.vmem %s3, %s459
        $region64: #{_self_attention_forward.1} parent=47 // pred_fallthru
          _
      $region48: #{_self_attention_forward.1} parent=5 // pred_fallthru
        _
      %p461 = scmp.le.s32.totalorder 1, %s29
      %p462 = scmp.lt.s32.totalorder %s29, 3
      %p463 = pnand %p461, %p462
      %p464 = pneg %p463
      // Predicated region
      $region65: #{_self_attention_forward.1} parent=5 // pred_check
        _
      $region66: #{_self_attention_forward.1} parent=5 // pred_check_branch
        %466 = sbr.rel (%p463) target = $region68
      $region67: #{_self_attention_forward.1} parent=5 // pred_region
        %s467 = ssub.s32 %s29, 1
        %s468 = sand.u32 %s42, 1
        %s469 = scalar_lea.sflag [#allocation3], %s468
        %s470 = sand.u32 %s42, 1
        %s471 = smul.addr %s470, 8
        %s472 = scalar_lea.vmem [#allocation2], %s471
        // Predicated region
        $region69: #{_self_attention_forward.1} parent=67 // pred_check
          %p473 = pneg %p55
        $region70: #{_self_attention_forward.1} parent=67 // pred_check_branch
          %475 = sbr.rel (%p473) target = $region72
        $region71: #{_self_attention_forward.1} parent=67 // pred_region
          %476 = dma.done %s469, 128
        $region72: #{_self_attention_forward.1} parent=67 // pred_fallthru
          _
        %s477 = sand.u32 %s34, 1
        %s478 = scalar_lea.sflag [#allocation6], %s477
        %s479 = sand.u32 %s68, 1
        %s480 = smul.addr %s479, 8
        %s481 = scalar_lea.vmem [#allocation5], %s480
        // Predicated region
        $region73: #{_self_attention_forward.1} parent=67 // pred_check
          %p482 = pneg %p81
        $region74: #{_self_attention_forward.1} parent=67 // pred_check_branch
          %484 = sbr.rel (%p482) target = $region76
        $region75: #{_self_attention_forward.1} parent=67 // pred_region
          %485 = dma.done %s478, 128
        $region76: #{_self_attention_forward.1} parent=67 // pred_fallthru
          _
        %s486 = sand.u32 %s34, 1
        %s487 = scalar_lea.sflag [#allocation6], %s486
        %s488 = sand.u32 %s94, 1
        %s489 = smul.addr %s488, 8
        %s490 = scalar_lea.vmem [#allocation7], %s489
        // Predicated region
        $region77: #{_self_attention_forward.1} parent=67 // pred_check
          %p491 = pneg %p107
        $region78: #{_self_attention_forward.1} parent=67 // pred_check_branch
          %493 = sbr.rel (%p491) target = $region80
        $region79: #{_self_attention_forward.1} parent=67 // pred_region
          %494 = dma.done %s487, 128
        $region80: #{_self_attention_forward.1} parent=67 // pred_fallthru
          _
        // Predicated region
        $region81: #{_self_attention_forward.1} parent=67 // pred_check
          %p495 = pneg %p196
        $region82: #{_self_attention_forward.1} parent=67 // pred_check_branch
          %497 = sbr.rel (%p495) target = $region84
        $region83: #{_self_attention_forward.1} parent=67 // pred_region
          %498 = dma.done [#allocation9], 512
        $region84: #{_self_attention_forward.1} parent=67 // pred_fallthru
          _
        // Predicated region
        $region85: #{_self_attention_forward.1} parent=67 // pred_check
          %p499 = pneg %p238
        $region86: #{_self_attention_forward.1} parent=67 // pred_check_branch
          %501 = sbr.rel (%p499) target = $region88
        $region87: #{_self_attention_forward.1} parent=67 // pred_region
          %502 = dma.done [#allocation9], 512
        $region88: #{_self_attention_forward.1} parent=67 // pred_fallthru
          _
        // Predicated region
        $region89: #{_self_attention_forward.1} parent=67 // pred_check
          %p503 = pneg %p280
        $region90: #{_self_attention_forward.1} parent=67 // pred_check_branch
          %505 = sbr.rel (%p503) target = $region92
        $region91: #{_self_attention_forward.1} parent=67 // pred_region
          %506 = dma.done [#allocation12], 512
        $region92: #{_self_attention_forward.1} parent=67 // pred_fallthru
          _
        %s507 = sand.u32 %s42, 1
        %s508 = scalar_lea.sflag [#allocation3], %s507
        %s509 = sand.u32 %s42, 1
        %s510 = smul.addr %s509, 8
        %s511 = scalar_lea.vmem [#allocation2], %s510
        %p512 = pneg %p55
        %p513 = pneg %p52
        %s514 = sand.u32 %s34, 1
        %s515 = scalar_lea.sflag [#allocation6], %s514
        %s516 = sand.u32 %s68, 1
        %s517 = smul.addr %s516, 8
        %s518 = scalar_lea.vmem [#allocation5], %s517
        %p519 = pneg %p81
        %p520 = pneg %p78
        %s521 = sand.u32 %s34, 1
        %s522 = scalar_lea.sflag [#allocation6], %s521
        %s523 = sand.u32 %s94, 1
        %s524 = smul.addr %s523, 8
        %s525 = scalar_lea.vmem [#allocation7], %s524
        %p526 = pneg %p107
        %p527 = pneg %p104
        %p528 = scmp.lt.s32.totalorder %s34, 1
        %s529 = scalar_select %p528, %s34, 1
        %s530 = smul.addr %s529, 8
        %s531 = scalar_lea.vmem %s3, %s530
        %p532 = pneg %p133
        %p533 = pneg %p130
        %p534 = pneg %p154
        %p535 = pneg %p151
        %p536 = pneg %p175
        %p537 = pneg %p172
        %p538 = pneg %p196
        %p539 = pneg %p193
        %p540 = pneg %p217
        %p541 = pneg %p214
        %p542 = pneg %p238
        %p543 = pneg %p235
        %p544 = pneg %p259
        %p545 = pneg %p256
        %p546 = pneg %p280
        %p547 = pneg %p277
        %p548 = pneg %p301
        %p549 = pneg %p298
        %p550 = pneg %p327
        %p551 = pneg %p324
        %s552 = sand.u32 %s314, 1
        %s553 = scalar_lea.sflag [#allocation4], %s552
        %s554 = sand.u32 %s314, 1
        %s555 = smul.addr %s554, 8
        %s556 = scalar_lea.vmem [#allocation13], %s555
        %p557 = scmp.lt.s32.totalorder %s34, 1
        %s558 = scalar_select %p557, %s34, 1
        %s559 = smul.addr %s558, 8
        %s560 = scalar_lea.vmem %s3, %s559
        %v561 = vld [vmem:[%s472] sm:$0xff]
        %v562 = vld [vmem:[%s481] sm:$0xff]
        %v563 = vld [vmem:[%s490] sm:$0xff]
        %v564 = vld [vmem:[%s560] sm:$0xff]
        %v565 = vld [vmem:[%s4] sm:$0xff]
        %v566 = vld [vmem:[%s4 + $0x8] sm:$0xff]
        %v567 = vld [vmem:[%s4 + $0x10] sm:$0xff]
        %v568 = vld [vmem:[%s4 + $0x18] sm:$0xff]
        %v569 = vld [vmem:[%s5] sm:$0x1]
        %v571 = vlaneseq
        %v572 = vshrl.u32 %v571, 7
        %v573 = vsub.s32 0, %v572
        %v574 = vrot.slane %v569, %v573
        %vm576 = vcmask 261120
        %v578 = vsel %vm576, %v561, 0
        %v581 = vsel %vm576, %v565, 0
        %v584 = vsel %vm576, %v566, 0
        %v587 = vsel %vm576, %v567, 0
        %v590 = vsel %vm576, %v568, 0
        %592 = vmatprep.subr.mxu0 0.0
        %593 = vmatpush1.xpose.msra.mxu0 0.0
        %594 = vmatprep.subr.mxu0 0.0
        %595 = vmatpush1.xpose.msra.mxu0 0.0
        %596 = vmatprep.subr.mxu0 0.0
        %597 = vmatpush1.xpose.msra.mxu0 0.0
        %598 = vmatprep.subr.mxu0 0.0
        %599 = vmatpush1.xpose.msra.mxu0 0.0
        %600 = vmatprep.subr.mxu0 0.0
        %601 = vmatpush1.xpose.msra.mxu0 0.0
        %602 = vmatprep.subr.mxu0 0.0
        %603 = vmatpush1.xpose.msra.mxu0 0.0
        %604 = vmatprep.subr.mxu0 0.0
        %605 = vmatpush1.xpose.msra.mxu0 0.0
        %606 = vmatprep.subr.mxu0 0.0
        %607 = vmatpush1.xpose.msra.mxu0 0.0
        %608 = vmatprep.subr.mxu0 0.0
        %609 = vmatpush1.xpose.msra.mxu0 0.0
        %610 = vmatprep.subr.mxu0 0.0
        %611 = vmatpush1.xpose.msra.mxu0 0.0
        %612 = vmatprep.subr.mxu0 0.0
        %613 = vmatpush1.xpose.msra.mxu0 0.0
        %614 = vmatprep.subr.mxu0 0.0
        %615 = vmatpush1.xpose.msra.mxu0 0.0
        %616 = vmatprep.subr.mxu0 0.0
        %617 = vmatpush1.xpose.msra.mxu0 %v590
        %618 = vmatprep.subr.mxu0 0.0
        %619 = vmatpush1.xpose.msra.mxu0 %v587
        %620 = vmatprep.subr.mxu0 0.0
        %621 = vmatpush1.xpose.msra.mxu0 %v584
        %622 = vmatprep.subr.mxu0 0.0
        %623 = vmatpush1.xpose.msra.mxu0 %v581
        %624 = vmatprep.subr.mxu0 0.0
        %625 = vmatpush2.xpose.msra.mxu0 0.0
        %626 = vmatprep.subr.mxu0 0.0
        %627 = vmatpush2.xpose.msra.mxu0 0.0
        %628 = vmatprep.subr.mxu0 0.0
        %629 = vmatpush2.xpose.msra.mxu0 0.0
        %630 = vmatprep.subr.mxu0 0.0
        %631 = vmatpush2.xpose.msra.mxu0 0.0
        %632 = vmatprep.subr.mxu0 0.0
        %633 = vmatpush2.xpose.msra.mxu0 0.0
        %634 = vmatprep.subr.mxu0 0.0
        %635 = vmatpush2.xpose.msra.mxu0 0.0
        %636 = vmatprep.subr.mxu0 0.0
        %637 = vmatpush2.xpose.msra.mxu0 0.0
        %638 = vmatprep.subr.mxu0 0.0
        %639 = vmatpush2.xpose.msra.mxu0 0.0
        %640 = vmatprep.subr.mxu0 0.0
        %641 = vmatpush2.xpose.msra.mxu0 0.0
        %642 = vmatprep.subr.mxu0 0.0
        %643 = vmatpush2.xpose.msra.mxu0 0.0
        %644 = vmatprep.subr.mxu0 0.0
        %645 = vmatpush2.xpose.msra.mxu0 0.0
        %646 = vmatprep.subr.mxu0 0.0
        %647 = vmatpush2.xpose.msra.mxu0 0.0
        %648 = vmatprep.subr.mxu0 0.0
        %649 = vmatpush2.xpose.msra.mxu0 0.0
        %650 = vmatprep.subr.mxu0 0.0
        %651 = vmatpush2.xpose.msra.mxu0 0.0
        %652 = vmatprep.subr.mxu0 0.0
        %653 = vmatpush2.xpose.msra.mxu0 0.0
        %654 = vmatprep.subr.mxu0 0.0
        %655 = vmatpush2.xpose.msra.mxu0 0.0
        %656 = vmatprep.mubr.f32.mxu0 0.0
        %657 = vmatmul.mubr.f32.gmra.mxu0 %v578
        %v658 = vpop.f32.mrf.mxu0
        %v659 = vadd.f32 %v574, %v658
        %v660 = vpop.f32.mrf.mxu0
        %661 = vdwg.mxu0
        %v662 = vld [vmem:[#allocation8] sm:$0xff]
        %v663 = vld [vmem:[#allocation8 + $0x8] sm:$0xff]
        %v664 = vld [vmem:[#allocation8 + $0x10] sm:$0xff]
        %v665 = vld [vmem:[#allocation8 + $0x18] sm:$0xff]
        %v666 = vld [vmem:[%s7] sm:$0x1]
        %v668 = vlaneseq
        %v669 = vshrl.u32 %v668, 7
        %v670 = vsub.s32 0, %v669
        %v671 = vrot.slane %v666, %v670
        %v674 = vsel %vm576, %v562, 0
        %v677 = vsel %vm576, %v662, 0
        %v680 = vsel %vm576, %v663, 0
        %v683 = vsel %vm576, %v664, 0
        %v686 = vsel %vm576, %v665, 0
        %688 = vmatprep.subr.mxu0 0.0
        %689 = vmatpush1.xpose.msra.mxu0 0.0
        %690 = vmatprep.subr.mxu0 0.0
        %691 = vmatpush1.xpose.msra.mxu0 0.0
        %692 = vmatprep.subr.mxu0 0.0
        %693 = vmatpush1.xpose.msra.mxu0 0.0
        %694 = vmatprep.subr.mxu0 0.0
        %695 = vmatpush1.xpose.msra.mxu0 0.0
        %696 = vmatprep.subr.mxu0 0.0
        %697 = vmatpush1.xpose.msra.mxu0 0.0
        %698 = vmatprep.subr.mxu0 0.0
        %699 = vmatpush1.xpose.msra.mxu0 0.0
        %700 = vmatprep.subr.mxu0 0.0
        %701 = vmatpush1.xpose.msra.mxu0 0.0
        %702 = vmatprep.subr.mxu0 0.0
        %703 = vmatpush1.xpose.msra.mxu0 0.0
        %704 = vmatprep.subr.mxu0 0.0
        %705 = vmatpush1.xpose.msra.mxu0 0.0
        %706 = vmatprep.subr.mxu0 0.0
        %707 = vmatpush1.xpose.msra.mxu0 0.0
        %708 = vmatprep.subr.mxu0 0.0
        %709 = vmatpush1.xpose.msra.mxu0 0.0
        %710 = vmatprep.subr.mxu0 0.0
        %711 = vmatpush1.xpose.msra.mxu0 0.0
        %712 = vmatprep.subr.mxu0 0.0
        %713 = vmatpush1.xpose.msra.mxu0 %v686
        %714 = vmatprep.subr.mxu0 0.0
        %715 = vmatpush1.xpose.msra.mxu0 %v683
        %716 = vmatprep.subr.mxu0 0.0
        %717 = vmatpush1.xpose.msra.mxu0 %v680
        %718 = vmatprep.subr.mxu0 0.0
        %719 = vmatpush1.xpose.msra.mxu0 %v677
        %720 = vmatprep.subr.mxu0 0.0
        %721 = vmatpush2.xpose.msra.mxu0 0.0
        %722 = vmatprep.subr.mxu0 0.0
        %723 = vmatpush2.xpose.msra.mxu0 0.0
        %724 = vmatprep.subr.mxu0 0.0
        %725 = vmatpush2.xpose.msra.mxu0 0.0
        %726 = vmatprep.subr.mxu0 0.0
        %727 = vmatpush2.xpose.msra.mxu0 0.0
        %728 = vmatprep.subr.mxu0 0.0
        %729 = vmatpush2.xpose.msra.mxu0 0.0
        %730 = vmatprep.subr.mxu0 0.0
        %731 = vmatpush2.xpose.msra.mxu0 0.0
        %732 = vmatprep.subr.mxu0 0.0
        %733 = vmatpush2.xpose.msra.mxu0 0.0
        %734 = vmatprep.subr.mxu0 0.0
        %735 = vmatpush2.xpose.msra.mxu0 0.0
        %736 = vmatprep.subr.mxu0 0.0
        %737 = vmatpush2.xpose.msra.mxu0 0.0
        %738 = vmatprep.subr.mxu0 0.0
        %739 = vmatpush2.xpose.msra.mxu0 0.0
        %740 = vmatprep.subr.mxu0 0.0
        %741 = vmatpush2.xpose.msra.mxu0 0.0
        %742 = vmatprep.subr.mxu0 0.0
        %743 = vmatpush2.xpose.msra.mxu0 0.0
        %744 = vmatprep.subr.mxu0 0.0
        %745 = vmatpush2.xpose.msra.mxu0 0.0
        %746 = vmatprep.subr.mxu0 0.0
        %747 = vmatpush2.xpose.msra.mxu0 0.0
        %748 = vmatprep.subr.mxu0 0.0
        %749 = vmatpush2.xpose.msra.mxu0 0.0
        %750 = vmatprep.subr.mxu0 0.0
        %751 = vmatpush2.xpose.msra.mxu0 0.0
        %752 = vmatprep.mubr.f32.mxu0 0.0
        %753 = vmatmul.mubr.f32.gmra.mxu0 %v674
        %v754 = vpop.f32.mrf.mxu0
        %v755 = vadd.f32 %v671, %v754
        %v756 = vpop.f32.mrf.mxu0
        %757 = vdwg.mxu0
        %v758 = vld [vmem:[#allocation10] sm:$0xff]
        %v759 = vld [vmem:[#allocation10 + $0x8] sm:$0xff]
        %v760 = vld [vmem:[#allocation10 + $0x10] sm:$0xff]
        %v761 = vld [vmem:[#allocation10 + $0x18] sm:$0xff]
        %v762 = vld [vmem:[%s9] sm:$0x1]
        %v764 = vlaneseq
        %v765 = vshrl.u32 %v764, 7
        %v766 = vsub.s32 0, %v765
        %v767 = vrot.slane %v762, %v766
        %v770 = vsel %vm576, %v563, 0
        %v773 = vsel %vm576, %v758, 0
        %v776 = vsel %vm576, %v759, 0
        %v779 = vsel %vm576, %v760, 0
        %v782 = vsel %vm576, %v761, 0
        %784 = vmatprep.subr.mxu0 0.0
        %785 = vmatpush1.xpose.msra.mxu0 0.0
        %786 = vmatprep.subr.mxu0 0.0
        %787 = vmatpush1.xpose.msra.mxu0 0.0
        %788 = vmatprep.subr.mxu0 0.0
        %789 = vmatpush1.xpose.msra.mxu0 0.0
        %790 = vmatprep.subr.mxu0 0.0
        %791 = vmatpush1.xpose.msra.mxu0 0.0
        %792 = vmatprep.subr.mxu0 0.0
        %793 = vmatpush1.xpose.msra.mxu0 0.0
        %794 = vmatprep.subr.mxu0 0.0
        %795 = vmatpush1.xpose.msra.mxu0 0.0
        %796 = vmatprep.subr.mxu0 0.0
        %797 = vmatpush1.xpose.msra.mxu0 0.0
        %798 = vmatprep.subr.mxu0 0.0
        %799 = vmatpush1.xpose.msra.mxu0 0.0
        %800 = vmatprep.subr.mxu0 0.0
        %801 = vmatpush1.xpose.msra.mxu0 0.0
        %802 = vmatprep.subr.mxu0 0.0
        %803 = vmatpush1.xpose.msra.mxu0 0.0
        %804 = vmatprep.subr.mxu0 0.0
        %805 = vmatpush1.xpose.msra.mxu0 0.0
        %806 = vmatprep.subr.mxu0 0.0
        %807 = vmatpush1.xpose.msra.mxu0 0.0
        %808 = vmatprep.subr.mxu0 0.0
        %809 = vmatpush1.xpose.msra.mxu0 %v782
        %810 = vmatprep.subr.mxu0 0.0
        %811 = vmatpush1.xpose.msra.mxu0 %v779
        %812 = vmatprep.subr.mxu0 0.0
        %813 = vmatpush1.xpose.msra.mxu0 %v776
        %814 = vmatprep.subr.mxu0 0.0
        %815 = vmatpush1.xpose.msra.mxu0 %v773
        %816 = vmatprep.subr.mxu0 0.0
        %817 = vmatpush2.xpose.msra.mxu0 0.0
        %818 = vmatprep.subr.mxu0 0.0
        %819 = vmatpush2.xpose.msra.mxu0 0.0
        %820 = vmatprep.subr.mxu0 0.0
        %821 = vmatpush2.xpose.msra.mxu0 0.0
        %822 = vmatprep.subr.mxu0 0.0
        %823 = vmatpush2.xpose.msra.mxu0 0.0
        %824 = vmatprep.subr.mxu0 0.0
        %825 = vmatpush2.xpose.msra.mxu0 0.0
        %826 = vmatprep.subr.mxu0 0.0
        %827 = vmatpush2.xpose.msra.mxu0 0.0
        %828 = vmatprep.subr.mxu0 0.0
        %829 = vmatpush2.xpose.msra.mxu0 0.0
        %830 = vmatprep.subr.mxu0 0.0
        %831 = vmatpush2.xpose.msra.mxu0 0.0
        %832 = vmatprep.subr.mxu0 0.0
        %833 = vmatpush2.xpose.msra.mxu0 0.0
        %834 = vmatprep.subr.mxu0 0.0
        %835 = vmatpush2.xpose.msra.mxu0 0.0
        %836 = vmatprep.subr.mxu0 0.0
        %837 = vmatpush2.xpose.msra.mxu0 0.0
        %838 = vmatprep.subr.mxu0 0.0
        %839 = vmatpush2.xpose.msra.mxu0 0.0
        %840 = vmatprep.subr.mxu0 0.0
        %841 = vmatpush2.xpose.msra.mxu0 0.0
        %842 = vmatprep.subr.mxu0 0.0
        %843 = vmatpush2.xpose.msra.mxu0 0.0
        %844 = vmatprep.subr.mxu0 0.0
        %845 = vmatpush2.xpose.msra.mxu0 0.0
        %846 = vmatprep.subr.mxu0 0.0
        %847 = vmatpush2.xpose.msra.mxu0 0.0
        %848 = vmatprep.mubr.f32.mxu0 0.0
        %849 = vmatmul.mubr.f32.gmra.mxu0 %v770
        %v850 = vpop.f32.mrf.mxu0
        %v851 = vadd.f32 %v767, %v850
        %v852 = vpop.f32.mrf.mxu0
        %853 = vdwg.mxu0
        %vm854 = vcmask 64512
        %v856 = vsel %vm854, %v659, 0
        %v859 = vsel %vm854, %v755, 0
        %861 = vmatprep.subr.mxu0 0.0
        %862 = vmatpush1.xpose.msra.mxu0 0.0
        %863 = vmatprep.subr.mxu0 0.0
        %864 = vmatpush1.xpose.msra.mxu0 0.0
        %865 = vmatprep.subr.mxu0 0.0
        %866 = vmatpush1.xpose.msra.mxu0 0.0
        %867 = vmatprep.subr.mxu0 0.0
        %868 = vmatpush1.xpose.msra.mxu0 0.0
        %869 = vmatprep.subr.mxu0 0.0
        %870 = vmatpush1.xpose.msra.mxu0 0.0
        %871 = vmatprep.subr.mxu0 0.0
        %872 = vmatpush1.xpose.msra.mxu0 0.0
        %873 = vmatprep.subr.mxu0 0.0
        %874 = vmatpush1.xpose.msra.mxu0 0.0
        %875 = vmatprep.subr.mxu0 0.0
        %876 = vmatpush1.xpose.msra.mxu0 0.0
        %877 = vmatprep.subr.mxu0 0.0
        %878 = vmatpush1.xpose.msra.mxu0 0.0
        %879 = vmatprep.subr.mxu0 0.0
        %880 = vmatpush1.xpose.msra.mxu0 0.0
        %881 = vmatprep.subr.mxu0 0.0
        %882 = vmatpush1.xpose.msra.mxu0 0.0
        %883 = vmatprep.subr.mxu0 0.0
        %884 = vmatpush1.xpose.msra.mxu0 0.0
        %885 = vmatprep.subr.mxu0 0.0
        %886 = vmatpush1.xpose.msra.mxu0 0.0
        %887 = vmatprep.subr.mxu0 0.0
        %888 = vmatpush1.xpose.msra.mxu0 0.0
        %889 = vmatprep.subr.mxu0 0.0
        %890 = vmatpush1.xpose.msra.mxu0 0.0
        %891 = vmatprep.subr.mxu0 0.0
        %892 = vmatpush1.xpose.msra.mxu0 %v859
        %893 = vmatprep.subr.mxu0 0.0
        %894 = vmatpush2.xpose.msra.mxu0 0.0
        %895 = vmatprep.subr.mxu0 0.0
        %896 = vmatpush2.xpose.msra.mxu0 0.0
        %897 = vmatprep.subr.mxu0 0.0
        %898 = vmatpush2.xpose.msra.mxu0 0.0
        %899 = vmatprep.subr.mxu0 0.0
        %900 = vmatpush2.xpose.msra.mxu0 0.0
        %901 = vmatprep.subr.mxu0 0.0
        %902 = vmatpush2.xpose.msra.mxu0 0.0
        %903 = vmatprep.subr.mxu0 0.0
        %904 = vmatpush2.xpose.msra.mxu0 0.0
        %905 = vmatprep.subr.mxu0 0.0
        %906 = vmatpush2.xpose.msra.mxu0 0.0
        %907 = vmatprep.subr.mxu0 0.0
        %908 = vmatpush2.xpose.msra.mxu0 0.0
        %909 = vmatprep.subr.mxu0 0.0
        %910 = vmatpush2.xpose.msra.mxu0 0.0
        %911 = vmatprep.subr.mxu0 0.0
        %912 = vmatpush2.xpose.msra.mxu0 0.0
        %913 = vmatprep.subr.mxu0 0.0
        %914 = vmatpush2.xpose.msra.mxu0 0.0
        %915 = vmatprep.subr.mxu0 0.0
        %916 = vmatpush2.xpose.msra.mxu0 0.0
        %917 = vmatprep.subr.mxu0 0.0
        %918 = vmatpush2.xpose.msra.mxu0 0.0
        %919 = vmatprep.subr.mxu0 0.0
        %920 = vmatpush2.xpose.msra.mxu0 0.0
        %921 = vmatprep.subr.mxu0 0.0
        %922 = vmatpush2.xpose.msra.mxu0 0.0
        %923 = vmatprep.subr.mxu0 0.0
        %924 = vmatpush2.xpose.msra.mxu0 0.0
        %925 = vmatprep.mubr.f32.mxu0 0.0
        %926 = vmatmul.mubr.f32.gmra.mxu0 %v856
        %v927 = vpop.f32.mrf.mxu0
        %v928 = vadd.f32 %v564, %v927
        %v929 = vpop.f32.mrf.mxu0
        %930 = vdwg.mxu0
        %v931 = vmul.f32 %v928, 0.17677669
        %v932 = vsel %vm854, %v931, -inf
        %933 = vmax.xlane.f32.xlu0 %v932
        %v934 = vpop.xlane.xlu0 %933
        %v935 = vsub.f32 %v931, %v934
        %v936 = vmul.f32 %v935, 1.442695
        %v937 = vpow.pop %v936
        %v938 = vsel %vm854, %v937, 0.0
        %939 = vadd.xlane.f32.xlu0 %v938
        %v940 = vpop.xlane.xlu0 %939
        %v941 = vrcp.pop %v940
        %v942 = vmul.f32 %v937, %v941
        %v944 = vsel %vm854, %v942, 0
        %946 = vmatprep.subr.mxu0 0.0
        %947 = vmatpush1.msra.mxu0 0.0
        %948 = vmatprep.subr.mxu0 0.0
        %949 = vmatpush1.msra.mxu0 0.0
        %950 = vmatprep.subr.mxu0 0.0
        %951 = vmatpush1.msra.mxu0 0.0
        %952 = vmatprep.subr.mxu0 0.0
        %953 = vmatpush1.msra.mxu0 0.0
        %954 = vmatprep.subr.mxu0 0.0
        %955 = vmatpush1.msra.mxu0 0.0
        %956 = vmatprep.subr.mxu0 0.0
        %957 = vmatpush1.msra.mxu0 0.0
        %958 = vmatprep.subr.mxu0 0.0
        %959 = vmatpush1.msra.mxu0 0.0
        %960 = vmatprep.subr.mxu0 0.0
        %961 = vmatpush1.msra.mxu0 0.0
        %962 = vmatprep.subr.mxu0 0.0
        %963 = vmatpush1.msra.mxu0 0.0
        %964 = vmatprep.subr.mxu0 0.0
        %965 = vmatpush1.msra.mxu0 0.0
        %966 = vmatprep.subr.mxu0 0.0
        %967 = vmatpush1.msra.mxu0 0.0
        %968 = vmatprep.subr.mxu0 0.0
        %969 = vmatpush1.msra.mxu0 0.0
        %970 = vmatprep.subr.mxu0 0.0
        %971 = vmatpush1.msra.mxu0 0.0
        %972 = vmatprep.subr.mxu0 0.0
        %973 = vmatpush1.msra.mxu0 0.0
        %974 = vmatprep.subr.mxu0 0.0
        %975 = vmatpush1.msra.mxu0 0.0
        %976 = vmatprep.subr.mxu0 0.0
        %977 = vmatpush1.msra.mxu0 %v851
        %978 = vmatprep.subr.mxu0 0.0
        %979 = vmatpush2.msra.mxu0 0.0
        %980 = vmatprep.subr.mxu0 0.0
        %981 = vmatpush2.msra.mxu0 0.0
        %982 = vmatprep.subr.mxu0 0.0
        %983 = vmatpush2.msra.mxu0 0.0
        %984 = vmatprep.subr.mxu0 0.0
        %985 = vmatpush2.msra.mxu0 0.0
        %986 = vmatprep.subr.mxu0 0.0
        %987 = vmatpush2.msra.mxu0 0.0
        %988 = vmatprep.subr.mxu0 0.0
        %989 = vmatpush2.msra.mxu0 0.0
        %990 = vmatprep.subr.mxu0 0.0
        %991 = vmatpush2.msra.mxu0 0.0
        %992 = vmatprep.subr.mxu0 0.0
        %993 = vmatpush2.msra.mxu0 0.0
        %994 = vmatprep.subr.mxu0 0.0
        %995 = vmatpush2.msra.mxu0 0.0
        %996 = vmatprep.subr.mxu0 0.0
        %997 = vmatpush2.msra.mxu0 0.0
        %998 = vmatprep.subr.mxu0 0.0
        %999 = vmatpush2.msra.mxu0 0.0
        %1000 = vmatprep.subr.mxu0 0.0
        %1001 = vmatpush2.msra.mxu0 0.0
        %1002 = vmatprep.subr.mxu0 0.0
        %1003 = vmatpush2.msra.mxu0 0.0
        %1004 = vmatprep.subr.mxu0 0.0
        %1005 = vmatpush2.msra.mxu0 0.0
        %1006 = vmatprep.subr.mxu0 0.0
        %1007 = vmatpush2.msra.mxu0 0.0
        %1008 = vmatprep.subr.mxu0 0.0
        %1009 = vmatpush2.msra.mxu0 0.0
        %1010 = vmatprep.mubr.f32.mxu0 0.0
        %1011 = vmatmul.mubr.f32.gmra.mxu0 %v944
        %v1012 = vpop.f32.mrf.mxu0
        %v1013 = vadd.f32 0.0, %v1012
        %v1014 = vpop.f32.mrf.mxu0
        %1015 = vdwg.mxu0
        %1016 = vrot.lane.b32.xlu0 %v659, 120
        %v1017 = vpop.permute.xlu0 %1016
        %1018 = vrot.lane.b32.xlu0 %v755, 120
        %v1019 = vpop.permute.xlu0 %1018
        %v1020 = vsel %vm854, %v1017, 0
        %v1022 = vsel %vm854, %v1019, 0
        %1024 = vmatprep.subr.mxu0 0.0
        %1025 = vmatpush1.xpose.msra.mxu0 0.0
        %1026 = vmatprep.subr.mxu0 0.0
        %1027 = vmatpush1.xpose.msra.mxu0 0.0
        %1028 = vmatprep.subr.mxu0 0.0
        %1029 = vmatpush1.xpose.msra.mxu0 0.0
        %1030 = vmatprep.subr.mxu0 0.0
        %1031 = vmatpush1.xpose.msra.mxu0 0.0
        %1032 = vmatprep.subr.mxu0 0.0
        %1033 = vmatpush1.xpose.msra.mxu0 0.0
        %1034 = vmatprep.subr.mxu0 0.0
        %1035 = vmatpush1.xpose.msra.mxu0 0.0
        %1036 = vmatprep.subr.mxu0 0.0
        %1037 = vmatpush1.xpose.msra.mxu0 0.0
        %1038 = vmatprep.subr.mxu0 0.0
        %1039 = vmatpush1.xpose.msra.mxu0 0.0
        %1040 = vmatprep.subr.mxu0 0.0
        %1041 = vmatpush1.xpose.msra.mxu0 0.0
        %1042 = vmatprep.subr.mxu0 0.0
        %1043 = vmatpush1.xpose.msra.mxu0 0.0
        %1044 = vmatprep.subr.mxu0 0.0
        %1045 = vmatpush1.xpose.msra.mxu0 0.0
        %1046 = vmatprep.subr.mxu0 0.0
        %1047 = vmatpush1.xpose.msra.mxu0 0.0
        %1048 = vmatprep.subr.mxu0 0.0
        %1049 = vmatpush1.xpose.msra.mxu0 0.0
        %1050 = vmatprep.subr.mxu0 0.0
        %1051 = vmatpush1.xpose.msra.mxu0 0.0
        %1052 = vmatprep.subr.mxu0 0.0
        %1053 = vmatpush1.xpose.msra.mxu0 0.0
        %1054 = vmatprep.subr.mxu0 0.0
        %1055 = vmatpush1.xpose.msra.mxu0 %v1022
        %1056 = vmatprep.subr.mxu0 0.0
        %1057 = vmatpush2.xpose.msra.mxu0 0.0
        %1058 = vmatprep.subr.mxu0 0.0
        %1059 = vmatpush2.xpose.msra.mxu0 0.0
        %1060 = vmatprep.subr.mxu0 0.0
        %1061 = vmatpush2.xpose.msra.mxu0 0.0
        %1062 = vmatprep.subr.mxu0 0.0
        %1063 = vmatpush2.xpose.msra.mxu0 0.0
        %1064 = vmatprep.subr.mxu0 0.0
        %1065 = vmatpush2.xpose.msra.mxu0 0.0
        %1066 = vmatprep.subr.mxu0 0.0
        %1067 = vmatpush2.xpose.msra.mxu0 0.0
        %1068 = vmatprep.subr.mxu0 0.0
        %1069 = vmatpush2.xpose.msra.mxu0 0.0
        %1070 = vmatprep.subr.mxu0 0.0
        %1071 = vmatpush2.xpose.msra.mxu0 0.0
        %1072 = vmatprep.subr.mxu0 0.0
        %1073 = vmatpush2.xpose.msra.mxu0 0.0
        %1074 = vmatprep.subr.mxu0 0.0
        %1075 = vmatpush2.xpose.msra.mxu0 0.0
        %1076 = vmatprep.subr.mxu0 0.0
        %1077 = vmatpush2.xpose.msra.mxu0 0.0
        %1078 = vmatprep.subr.mxu0 0.0
        %1079 = vmatpush2.xpose.msra.mxu0 0.0
        %1080 = vmatprep.subr.mxu0 0.0
        %1081 = vmatpush2.xpose.msra.mxu0 0.0
        %1082 = vmatprep.subr.mxu0 0.0
        %1083 = vmatpush2.xpose.msra.mxu0 0.0
        %1084 = vmatprep.subr.mxu0 0.0
        %1085 = vmatpush2.xpose.msra.mxu0 0.0
        %1086 = vmatprep.subr.mxu0 0.0
        %1087 = vmatpush2.xpose.msra.mxu0 0.0
        %1088 = vmatprep.mubr.f32.mxu0 0.0
        %1089 = vmatmul.mubr.f32.gmra.mxu0 %v1020
        %v1090 = vpop.f32.mrf.mxu0
        %v1091 = vadd.f32 %v564, %v1090
        %v1092 = vpop.f32.mrf.mxu0
        %1093 = vdwg.mxu0
        %v1094 = vmul.f32 %v1091, 0.17677669
        %v1095 = vsel %vm854, %v1094, -inf
        %1096 = vmax.xlane.f32.xlu0 %v1095
        %v1097 = vpop.xlane.xlu0 %1096
        %v1098 = vsub.f32 %v1094, %v1097
        %v1099 = vmul.f32 %v1098, 1.442695
        %v1100 = vpow.pop %v1099
        %v1101 = vsel %vm854, %v1100, 0.0
        %1102 = vadd.xlane.f32.xlu0 %v1101
        %v1103 = vpop.xlane.xlu0 %1102
        %v1104 = vrcp.pop %v1103
        %v1105 = vmul.f32 %v1100, %v1104
        %1107 = vrot.lane.b32.xlu0 %v851, 120
        %v1108 = vpop.permute.xlu0 %1107
        %v1111 = vsel %vm854, %v1105, 0
        %1113 = vmatprep.subr.mxu0 0.0
        %1114 = vmatpush1.msra.mxu0 0.0
        %1115 = vmatprep.subr.mxu0 0.0
        %1116 = vmatpush1.msra.mxu0 0.0
        %1117 = vmatprep.subr.mxu0 0.0
        %1118 = vmatpush1.msra.mxu0 0.0
        %1119 = vmatprep.subr.mxu0 0.0
        %1120 = vmatpush1.msra.mxu0 0.0
        %1121 = vmatprep.subr.mxu0 0.0
        %1122 = vmatpush1.msra.mxu0 0.0
        %1123 = vmatprep.subr.mxu0 0.0
        %1124 = vmatpush1.msra.mxu0 0.0
        %1125 = vmatprep.subr.mxu0 0.0
        %1126 = vmatpush1.msra.mxu0 0.0
        %1127 = vmatprep.subr.mxu0 0.0
        %1128 = vmatpush1.msra.mxu0 0.0
        %1129 = vmatprep.subr.mxu0 0.0
        %1130 = vmatpush1.msra.mxu0 0.0
        %1131 = vmatprep.subr.mxu0 0.0
        %1132 = vmatpush1.msra.mxu0 0.0
        %1133 = vmatprep.subr.mxu0 0.0
        %1134 = vmatpush1.msra.mxu0 0.0
        %1135 = vmatprep.subr.mxu0 0.0
        %1136 = vmatpush1.msra.mxu0 0.0
        %1137 = vmatprep.subr.mxu0 0.0
        %1138 = vmatpush1.msra.mxu0 0.0
        %1139 = vmatprep.subr.mxu0 0.0
        %1140 = vmatpush1.msra.mxu0 0.0
        %1141 = vmatprep.subr.mxu0 0.0
        %1142 = vmatpush1.msra.mxu0 0.0
        %1143 = vmatprep.subr.mxu0 0.0
        %1144 = vmatpush1.msra.mxu0 %v1108
        %1145 = vmatprep.subr.mxu0 0.0
        %1146 = vmatpush2.msra.mxu0 0.0
        %1147 = vmatprep.subr.mxu0 0.0
        %1148 = vmatpush2.msra.mxu0 0.0
        %1149 = vmatprep.subr.mxu0 0.0
        %1150 = vmatpush2.msra.mxu0 0.0
        %1151 = vmatprep.subr.mxu0 0.0
        %1152 = vmatpush2.msra.mxu0 0.0
        %1153 = vmatprep.subr.mxu0 0.0
        %1154 = vmatpush2.msra.mxu0 0.0
        %1155 = vmatprep.subr.mxu0 0.0
        %1156 = vmatpush2.msra.mxu0 0.0
        %1157 = vmatprep.subr.mxu0 0.0
        %1158 = vmatpush2.msra.mxu0 0.0
        %1159 = vmatprep.subr.mxu0 0.0
        %1160 = vmatpush2.msra.mxu0 0.0
        %1161 = vmatprep.subr.mxu0 0.0
        %1162 = vmatpush2.msra.mxu0 0.0
        %1163 = vmatprep.subr.mxu0 0.0
        %1164 = vmatpush2.msra.mxu0 0.0
        %1165 = vmatprep.subr.mxu0 0.0
        %1166 = vmatpush2.msra.mxu0 0.0
        %1167 = vmatprep.subr.mxu0 0.0
        %1168 = vmatpush2.msra.mxu0 0.0
        %1169 = vmatprep.subr.mxu0 0.0
        %1170 = vmatpush2.msra.mxu0 0.0
        %1171 = vmatprep.subr.mxu0 0.0
        %1172 = vmatpush2.msra.mxu0 0.0
        %1173 = vmatprep.subr.mxu0 0.0
        %1174 = vmatpush2.msra.mxu0 0.0
        %1175 = vmatprep.subr.mxu0 0.0
        %1176 = vmatpush2.msra.mxu0 0.0
        %1177 = vmatprep.mubr.f32.mxu0 0.0
        %1178 = vmatmul.mubr.f32.gmra.mxu0 %v1111
        %v1179 = vpop.f32.mrf.mxu0
        %v1180 = vadd.f32 0.0, %v1179
        %v1181 = vpop.f32.mrf.mxu0
        %1182 = vdwg.mxu0
        %1183 = vrot.lane.b32.xlu0 %v659, 112
        %v1184 = vpop.permute.xlu0 %1183
        %1185 = vrot.lane.b32.xlu0 %v755, 112
        %v1186 = vpop.permute.xlu0 %1185
        %v1187 = vsel %vm854, %v1184, 0
        %v1189 = vsel %vm854, %v1186, 0
        %1191 = vmatprep.subr.mxu0 0.0
        %1192 = vmatpush1.xpose.msra.mxu0 0.0
        %1193 = vmatprep.subr.mxu0 0.0
        %1194 = vmatpush1.xpose.msra.mxu0 0.0
        %1195 = vmatprep.subr.mxu0 0.0
        %1196 = vmatpush1.xpose.msra.mxu0 0.0
        %1197 = vmatprep.subr.mxu0 0.0
        %1198 = vmatpush1.xpose.msra.mxu0 0.0
        %1199 = vmatprep.subr.mxu0 0.0
        %1200 = vmatpush1.xpose.msra.mxu0 0.0
        %1201 = vmatprep.subr.mxu0 0.0
        %1202 = vmatpush1.xpose.msra.mxu0 0.0
        %1203 = vmatprep.subr.mxu0 0.0
        %1204 = vmatpush1.xpose.msra.mxu0 0.0
        %1205 = vmatprep.subr.mxu0 0.0
        %1206 = vmatpush1.xpose.msra.mxu0 0.0
        %1207 = vmatprep.subr.mxu0 0.0
        %1208 = vmatpush1.xpose.msra.mxu0 0.0
        %1209 = vmatprep.subr.mxu0 0.0
        %1210 = vmatpush1.xpose.msra.mxu0 0.0
        %1211 = vmatprep.subr.mxu0 0.0
        %1212 = vmatpush1.xpose.msra.mxu0 0.0
        %1213 = vmatprep.subr.mxu0 0.0
        %1214 = vmatpush1.xpose.msra.mxu0 0.0
        %1215 = vmatprep.subr.mxu0 0.0
        %1216 = vmatpush1.xpose.msra.mxu0 0.0
        %1217 = vmatprep.subr.mxu0 0.0
        %1218 = vmatpush1.xpose.msra.mxu0 0.0
        %1219 = vmatprep.subr.mxu0 0.0
        %1220 = vmatpush1.xpose.msra.mxu0 0.0
        %1221 = vmatprep.subr.mxu0 0.0
        %1222 = vmatpush1.xpose.msra.mxu0 %v1189
        %1223 = vmatprep.subr.mxu0 0.0
        %1224 = vmatpush2.xpose.msra.mxu0 0.0
        %1225 = vmatprep.subr.mxu0 0.0
        %1226 = vmatpush2.xpose.msra.mxu0 0.0
        %1227 = vmatprep.subr.mxu0 0.0
        %1228 = vmatpush2.xpose.msra.mxu0 0.0
        %1229 = vmatprep.subr.mxu0 0.0
        %1230 = vmatpush2.xpose.msra.mxu0 0.0
        %1231 = vmatprep.subr.mxu0 0.0
        %1232 = vmatpush2.xpose.msra.mxu0 0.0
        %1233 = vmatprep.subr.mxu0 0.0
        %1234 = vmatpush2.xpose.msra.mxu0 0.0
        %1235 = vmatprep.subr.mxu0 0.0
        %1236 = vmatpush2.xpose.msra.mxu0 0.0
        %1237 = vmatprep.subr.mxu0 0.0
        %1238 = vmatpush2.xpose.msra.mxu0 0.0
        %1239 = vmatprep.subr.mxu0 0.0
        %1240 = vmatpush2.xpose.msra.mxu0 0.0
        %1241 = vmatprep.subr.mxu0 0.0
        %1242 = vmatpush2.xpose.msra.mxu0 0.0
        %1243 = vmatprep.subr.mxu0 0.0
        %1244 = vmatpush2.xpose.msra.mxu0 0.0
        %1245 = vmatprep.subr.mxu0 0.0
        %1246 = vmatpush2.xpose.msra.mxu0 0.0
        %1247 = vmatprep.subr.mxu0 0.0
        %1248 = vmatpush2.xpose.msra.mxu0 0.0
        %1249 = vmatprep.subr.mxu0 0.0
        %1250 = vmatpush2.xpose.msra.mxu0 0.0
        %1251 = vmatprep.subr.mxu0 0.0
        %1252 = vmatpush2.xpose.msra.mxu0 0.0
        %1253 = vmatprep.subr.mxu0 0.0
        %1254 = vmatpush2.xpose.msra.mxu0 0.0
        %1255 = vmatprep.mubr.f32.mxu0 0.0
        %1256 = vmatmul.mubr.f32.gmra.mxu0 %v1187
        %v1257 = vpop.f32.mrf.mxu0
        %v1258 = vadd.f32 %v564, %v1257
        %v1259 = vpop.f32.mrf.mxu0
        %1260 = vdwg.mxu0
        %v1261 = vmul.f32 %v1258, 0.17677669
        %v1262 = vsel %vm854, %v1261, -inf
        %1263 = vmax.xlane.f32.xlu0 %v1262
        %v1264 = vpop.xlane.xlu0 %1263
        %v1265 = vsub.f32 %v1261, %v1264
        %v1266 = vmul.f32 %v1265, 1.442695
        %v1267 = vpow.pop %v1266
        %v1268 = vsel %vm854, %v1267, 0.0
        %1269 = vadd.xlane.f32.xlu0 %v1268
        %v1270 = vpop.xlane.xlu0 %1269
        %v1271 = vrcp.pop %v1270
        %v1272 = vmul.f32 %v1267, %v1271
        %1273 = vrot.lane.b32.xlu0 %v851, 112
        %v1274 = vpop.permute.xlu0 %1273
        %v1277 = vsel %vm854, %v1272, 0
        %1279 = vmatprep.subr.mxu0 0.0
        %1280 = vmatpush1.msra.mxu0 0.0
        %1281 = vmatprep.subr.mxu0 0.0
        %1282 = vmatpush1.msra.mxu0 0.0
        %1283 = vmatprep.subr.mxu0 0.0
        %1284 = vmatpush1.msra.mxu0 0.0
        %1285 = vmatprep.subr.mxu0 0.0
        %1286 = vmatpush1.msra.mxu0 0.0
        %1287 = vmatprep.subr.mxu0 0.0
        %1288 = vmatpush1.msra.mxu0 0.0
        %1289 = vmatprep.subr.mxu0 0.0
        %1290 = vmatpush1.msra.mxu0 0.0
        %1291 = vmatprep.subr.mxu0 0.0
        %1292 = vmatpush1.msra.mxu0 0.0
        %1293 = vmatprep.subr.mxu0 0.0
        %1294 = vmatpush1.msra.mxu0 0.0
        %1295 = vmatprep.subr.mxu0 0.0
        %1296 = vmatpush1.msra.mxu0 0.0
        %1297 = vmatprep.subr.mxu0 0.0
        %1298 = vmatpush1.msra.mxu0 0.0
        %1299 = vmatprep.subr.mxu0 0.0
        %1300 = vmatpush1.msra.mxu0 0.0
        %1301 = vmatprep.subr.mxu0 0.0
        %1302 = vmatpush1.msra.mxu0 0.0
        %1303 = vmatprep.subr.mxu0 0.0
        %1304 = vmatpush1.msra.mxu0 0.0
        %1305 = vmatprep.subr.mxu0 0.0
        %1306 = vmatpush1.msra.mxu0 0.0
        %1307 = vmatprep.subr.mxu0 0.0
        %1308 = vmatpush1.msra.mxu0 0.0
        %1309 = vmatprep.subr.mxu0 0.0
        %1310 = vmatpush1.msra.mxu0 %v1274
        %1311 = vmatprep.subr.mxu0 0.0
        %1312 = vmatpush2.msra.mxu0 0.0
        %1313 = vmatprep.subr.mxu0 0.0
        %1314 = vmatpush2.msra.mxu0 0.0
        %1315 = vmatprep.subr.mxu0 0.0
        %1316 = vmatpush2.msra.mxu0 0.0
        %1317 = vmatprep.subr.mxu0 0.0
        %1318 = vmatpush2.msra.mxu0 0.0
        %1319 = vmatprep.subr.mxu0 0.0
        %1320 = vmatpush2.msra.mxu0 0.0
        %1321 = vmatprep.subr.mxu0 0.0
        %1322 = vmatpush2.msra.mxu0 0.0
        %1323 = vmatprep.subr.mxu0 0.0
        %1324 = vmatpush2.msra.mxu0 0.0
        %1325 = vmatprep.subr.mxu0 0.0
        %1326 = vmatpush2.msra.mxu0 0.0
        %1327 = vmatprep.subr.mxu0 0.0
        %1328 = vmatpush2.msra.mxu0 0.0
        %1329 = vmatprep.subr.mxu0 0.0
        %1330 = vmatpush2.msra.mxu0 0.0
        %1331 = vmatprep.subr.mxu0 0.0
        %1332 = vmatpush2.msra.mxu0 0.0
        %1333 = vmatprep.subr.mxu0 0.0
        %1334 = vmatpush2.msra.mxu0 0.0
        %1335 = vmatprep.subr.mxu0 0.0
        %1336 = vmatpush2.msra.mxu0 0.0
        %1337 = vmatprep.subr.mxu0 0.0
        %1338 = vmatpush2.msra.mxu0 0.0
        %1339 = vmatprep.subr.mxu0 0.0
        %1340 = vmatpush2.msra.mxu0 0.0
        %1341 = vmatprep.subr.mxu0 0.0
        %1342 = vmatpush2.msra.mxu0 0.0
        %1343 = vmatprep.mubr.f32.mxu0 0.0
        %1344 = vmatmul.mubr.f32.gmra.mxu0 %v1277
        %v1345 = vpop.f32.mrf.mxu0
        %v1346 = vadd.f32 0.0, %v1345
        %v1347 = vpop.f32.mrf.mxu0
        %1348 = vdwg.mxu0
        %1349 = vrot.lane.b32.xlu0 %v659, 104
        %v1350 = vpop.permute.xlu0 %1349
        %1351 = vrot.lane.b32.xlu0 %v755, 104
        %v1352 = vpop.permute.xlu0 %1351
        %v1353 = vsel %vm854, %v1350, 0
        %v1355 = vsel %vm854, %v1352, 0
        %1357 = vmatprep.subr.mxu0 0.0
        %1358 = vmatpush1.xpose.msra.mxu0 0.0
        %1359 = vmatprep.subr.mxu0 0.0
        %1360 = vmatpush1.xpose.msra.mxu0 0.0
        %1361 = vmatprep.subr.mxu0 0.0
        %1362 = vmatpush1.xpose.msra.mxu0 0.0
        %1363 = vmatprep.subr.mxu0 0.0
        %1364 = vmatpush1.xpose.msra.mxu0 0.0
        %1365 = vmatprep.subr.mxu0 0.0
        %1366 = vmatpush1.xpose.msra.mxu0 0.0
        %1367 = vmatprep.subr.mxu0 0.0
        %1368 = vmatpush1.xpose.msra.mxu0 0.0
        %1369 = vmatprep.subr.mxu0 0.0
        %1370 = vmatpush1.xpose.msra.mxu0 0.0
        %1371 = vmatprep.subr.mxu0 0.0
        %1372 = vmatpush1.xpose.msra.mxu0 0.0
        %1373 = vmatprep.subr.mxu0 0.0
        %1374 = vmatpush1.xpose.msra.mxu0 0.0
        %1375 = vmatprep.subr.mxu0 0.0
        %1376 = vmatpush1.xpose.msra.mxu0 0.0
        %1377 = vmatprep.subr.mxu0 0.0
        %1378 = vmatpush1.xpose.msra.mxu0 0.0
        %1379 = vmatprep.subr.mxu0 0.0
        %1380 = vmatpush1.xpose.msra.mxu0 0.0
        %1381 = vmatprep.subr.mxu0 0.0
        %1382 = vmatpush1.xpose.msra.mxu0 0.0
        %1383 = vmatprep.subr.mxu0 0.0
        %1384 = vmatpush1.xpose.msra.mxu0 0.0
        %1385 = vmatprep.subr.mxu0 0.0
        %1386 = vmatpush1.xpose.msra.mxu0 0.0
        %1387 = vmatprep.subr.mxu0 0.0
        %1388 = vmatpush1.xpose.msra.mxu0 %v1355
        %1389 = vmatprep.subr.mxu0 0.0
        %1390 = vmatpush2.xpose.msra.mxu0 0.0
        %1391 = vmatprep.subr.mxu0 0.0
        %1392 = vmatpush2.xpose.msra.mxu0 0.0
        %1393 = vmatprep.subr.mxu0 0.0
        %1394 = vmatpush2.xpose.msra.mxu0 0.0
        %1395 = vmatprep.subr.mxu0 0.0
        %1396 = vmatpush2.xpose.msra.mxu0 0.0
        %1397 = vmatprep.subr.mxu0 0.0
        %1398 = vmatpush2.xpose.msra.mxu0 0.0
        %1399 = vmatprep.subr.mxu0 0.0
        %1400 = vmatpush2.xpose.msra.mxu0 0.0
        %1401 = vmatprep.subr.mxu0 0.0
        %1402 = vmatpush2.xpose.msra.mxu0 0.0
        %1403 = vmatprep.subr.mxu0 0.0
        %1404 = vmatpush2.xpose.msra.mxu0 0.0
        %1405 = vmatprep.subr.mxu0 0.0
        %1406 = vmatpush2.xpose.msra.mxu0 0.0
        %1407 = vmatprep.subr.mxu0 0.0
        %1408 = vmatpush2.xpose.msra.mxu0 0.0
        %1409 = vmatprep.subr.mxu0 0.0
        %1410 = vmatpush2.xpose.msra.mxu0 0.0
        %1411 = vmatprep.subr.mxu0 0.0
        %1412 = vmatpush2.xpose.msra.mxu0 0.0
        %1413 = vmatprep.subr.mxu0 0.0
        %1414 = vmatpush2.xpose.msra.mxu0 0.0
        %1415 = vmatprep.subr.mxu0 0.0
        %1416 = vmatpush2.xpose.msra.mxu0 0.0
        %1417 = vmatprep.subr.mxu0 0.0
        %1418 = vmatpush2.xpose.msra.mxu0 0.0
        %1419 = vmatprep.subr.mxu0 0.0
        %1420 = vmatpush2.xpose.msra.mxu0 0.0
        %1421 = vmatprep.mubr.f32.mxu0 0.0
        %1422 = vmatmul.mubr.f32.gmra.mxu0 %v1353
        %v1423 = vpop.f32.mrf.mxu0
        %v1424 = vadd.f32 %v564, %v1423
        %v1425 = vpop.f32.mrf.mxu0
        %1426 = vdwg.mxu0
        %v1427 = vmul.f32 %v1424, 0.17677669
        %v1428 = vsel %vm854, %v1427, -inf
        %1429 = vmax.xlane.f32.xlu0 %v1428
        %v1430 = vpop.xlane.xlu0 %1429
        %v1431 = vsub.f32 %v1427, %v1430
        %v1432 = vmul.f32 %v1431, 1.442695
        %v1433 = vpow.pop %v1432
        %v1434 = vsel %vm854, %v1433, 0.0
        %1435 = vadd.xlane.f32.xlu0 %v1434
        %v1436 = vpop.xlane.xlu0 %1435
        %v1437 = vrcp.pop %v1436
        %v1438 = vmul.f32 %v1433, %v1437
        %1439 = vrot.lane.b32.xlu0 %v851, 104
        %v1440 = vpop.permute.xlu0 %1439
        %v1443 = vsel %vm854, %v1438, 0
        %1445 = vmatprep.subr.mxu0 0.0
        %1446 = vmatpush1.msra.mxu0 0.0
        %1447 = vmatprep.subr.mxu0 0.0
        %1448 = vmatpush1.msra.mxu0 0.0
        %1449 = vmatprep.subr.mxu0 0.0
        %1450 = vmatpush1.msra.mxu0 0.0
        %1451 = vmatprep.subr.mxu0 0.0
        %1452 = vmatpush1.msra.mxu0 0.0
        %1453 = vmatprep.subr.mxu0 0.0
        %1454 = vmatpush1.msra.mxu0 0.0
        %1455 = vmatprep.subr.mxu0 0.0
        %1456 = vmatpush1.msra.mxu0 0.0
        %1457 = vmatprep.subr.mxu0 0.0
        %1458 = vmatpush1.msra.mxu0 0.0
        %1459 = vmatprep.subr.mxu0 0.0
        %1460 = vmatpush1.msra.mxu0 0.0
        %1461 = vmatprep.subr.mxu0 0.0
        %1462 = vmatpush1.msra.mxu0 0.0
        %1463 = vmatprep.subr.mxu0 0.0
        %1464 = vmatpush1.msra.mxu0 0.0
        %1465 = vmatprep.subr.mxu0 0.0
        %1466 = vmatpush1.msra.mxu0 0.0
        %1467 = vmatprep.subr.mxu0 0.0
        %1468 = vmatpush1.msra.mxu0 0.0
        %1469 = vmatprep.subr.mxu0 0.0
        %1470 = vmatpush1.msra.mxu0 0.0
        %1471 = vmatprep.subr.mxu0 0.0
        %1472 = vmatpush1.msra.mxu0 0.0
        %1473 = vmatprep.subr.mxu0 0.0
        %1474 = vmatpush1.msra.mxu0 0.0
        %1475 = vmatprep.subr.mxu0 0.0
        %1476 = vmatpush1.msra.mxu0 %v1440
        %1477 = vmatprep.subr.mxu0 0.0
        %1478 = vmatpush2.msra.mxu0 0.0
        %1479 = vmatprep.subr.mxu0 0.0
        %1480 = vmatpush2.msra.mxu0 0.0
        %1481 = vmatprep.subr.mxu0 0.0
        %1482 = vmatpush2.msra.mxu0 0.0
        %1483 = vmatprep.subr.mxu0 0.0
        %1484 = vmatpush2.msra.mxu0 0.0
        %1485 = vmatprep.subr.mxu0 0.0
        %1486 = vmatpush2.msra.mxu0 0.0
        %1487 = vmatprep.subr.mxu0 0.0
        %1488 = vmatpush2.msra.mxu0 0.0
        %1489 = vmatprep.subr.mxu0 0.0
        %1490 = vmatpush2.msra.mxu0 0.0
        %1491 = vmatprep.subr.mxu0 0.0
        %1492 = vmatpush2.msra.mxu0 0.0
        %1493 = vmatprep.subr.mxu0 0.0
        %1494 = vmatpush2.msra.mxu0 0.0
        %1495 = vmatprep.subr.mxu0 0.0
        %1496 = vmatpush2.msra.mxu0 0.0
        %1497 = vmatprep.subr.mxu0 0.0
        %1498 = vmatpush2.msra.mxu0 0.0
        %1499 = vmatprep.subr.mxu0 0.0
        %1500 = vmatpush2.msra.mxu0 0.0
        %1501 = vmatprep.subr.mxu0 0.0
        %1502 = vmatpush2.msra.mxu0 0.0
        %1503 = vmatprep.subr.mxu0 0.0
        %1504 = vmatpush2.msra.mxu0 0.0
        %1505 = vmatprep.subr.mxu0 0.0
        %1506 = vmatpush2.msra.mxu0 0.0
        %1507 = vmatprep.subr.mxu0 0.0
        %1508 = vmatpush2.msra.mxu0 0.0
        %1509 = vmatprep.mubr.f32.mxu0 0.0
        %1510 = vmatmul.mubr.f32.gmra.mxu0 %v1443
        %v1511 = vpop.f32.mrf.mxu0
        %v1512 = vadd.f32 0.0, %v1511
        %v1513 = vpop.f32.mrf.mxu0
        %1514 = vdwg.mxu0
        %1516 = vrot.lane.b32.xlu0 %v1180, 8
        %v1517 = vpop.permute.xlu0 %1516
        %1520 = vrot.lane.b32.xlu0 %v1346, 16
        %v1521 = vpop.permute.xlu0 %1520
        %1524 = vrot.lane.b32.xlu0 %v1512, 24
        %v1525 = vpop.permute.xlu0 %1524
        %v1527 = vsel %vm854, %v1013, %v1517
        %vm1528 = vcmask 130048
        %v1529 = vsel %vm1528, %v1527, %v1521
        %vm1530 = vcmask 195584
        %v1531 = vsel %vm1530, %v1529, %v1525
        %v1532 = vld [vmem:[#allocation11] sm:$0xff]
        %v1533 = vld [vmem:[#allocation11 + $0x8] sm:$0xff]
        %v1534 = vld [vmem:[#allocation11 + $0x10] sm:$0xff]
        %v1535 = vld [vmem:[#allocation11 + $0x18] sm:$0xff]
        %v1536 = vld [vmem:[%s11] sm:$0x1]
        %v1538 = vlaneseq
        %v1539 = vshrl.u32 %v1538, 7
        %v1540 = vsub.s32 0, %v1539
        %v1541 = vrot.slane %v1536, %v1540
        %v1544 = vsel %vm576, %v1531, 0
        %v1547 = vsel %vm576, %v1532, 0
        %v1550 = vsel %vm576, %v1533, 0
        %v1553 = vsel %vm576, %v1534, 0
        %v1556 = vsel %vm576, %v1535, 0
        %1558 = vmatprep.subr.mxu0 0.0
        %1559 = vmatpush1.xpose.msra.mxu0 0.0
        %1560 = vmatprep.subr.mxu0 0.0
        %1561 = vmatpush1.xpose.msra.mxu0 0.0
        %1562 = vmatprep.subr.mxu0 0.0
        %1563 = vmatpush1.xpose.msra.mxu0 0.0
        %1564 = vmatprep.subr.mxu0 0.0
        %1565 = vmatpush1.xpose.msra.mxu0 0.0
        %1566 = vmatprep.subr.mxu0 0.0
        %1567 = vmatpush1.xpose.msra.mxu0 0.0
        %1568 = vmatprep.subr.mxu0 0.0
        %1569 = vmatpush1.xpose.msra.mxu0 0.0
        %1570 = vmatprep.subr.mxu0 0.0
        %1571 = vmatpush1.xpose.msra.mxu0 0.0
        %1572 = vmatprep.subr.mxu0 0.0
        %1573 = vmatpush1.xpose.msra.mxu0 0.0
        %1574 = vmatprep.subr.mxu0 0.0
        %1575 = vmatpush1.xpose.msra.mxu0 0.0
        %1576 = vmatprep.subr.mxu0 0.0
        %1577 = vmatpush1.xpose.msra.mxu0 0.0
        %1578 = vmatprep.subr.mxu0 0.0
        %1579 = vmatpush1.xpose.msra.mxu0 0.0
        %1580 = vmatprep.subr.mxu0 0.0
        %1581 = vmatpush1.xpose.msra.mxu0 0.0
        %1582 = vmatprep.subr.mxu0 0.0
        %1583 = vmatpush1.xpose.msra.mxu0 %v1556
        %1584 = vmatprep.subr.mxu0 0.0
        %1585 = vmatpush1.xpose.msra.mxu0 %v1553
        %1586 = vmatprep.subr.mxu0 0.0
        %1587 = vmatpush1.xpose.msra.mxu0 %v1550
        %1588 = vmatprep.subr.mxu0 0.0
        %1589 = vmatpush1.xpose.msra.mxu0 %v1547
        %1590 = vmatprep.subr.mxu0 0.0
        %1591 = vmatpush2.xpose.msra.mxu0 0.0
        %1592 = vmatprep.subr.mxu0 0.0
        %1593 = vmatpush2.xpose.msra.mxu0 0.0
        %1594 = vmatprep.subr.mxu0 0.0
        %1595 = vmatpush2.xpose.msra.mxu0 0.0
        %1596 = vmatprep.subr.mxu0 0.0
        %1597 = vmatpush2.xpose.msra.mxu0 0.0
        %1598 = vmatprep.subr.mxu0 0.0
        %1599 = vmatpush2.xpose.msra.mxu0 0.0
        %1600 = vmatprep.subr.mxu0 0.0
        %1601 = vmatpush2.xpose.msra.mxu0 0.0
        %1602 = vmatprep.subr.mxu0 0.0
        %1603 = vmatpush2.xpose.msra.mxu0 0.0
        %1604 = vmatprep.subr.mxu0 0.0
        %1605 = vmatpush2.xpose.msra.mxu0 0.0
        %1606 = vmatprep.subr.mxu0 0.0
        %1607 = vmatpush2.xpose.msra.mxu0 0.0
        %1608 = vmatprep.subr.mxu0 0.0
        %1609 = vmatpush2.xpose.msra.mxu0 0.0
        %1610 = vmatprep.subr.mxu0 0.0
        %1611 = vmatpush2.xpose.msra.mxu0 0.0
        %1612 = vmatprep.subr.mxu0 0.0
        %1613 = vmatpush2.xpose.msra.mxu0 0.0
        %1614 = vmatprep.subr.mxu0 0.0
        %1615 = vmatpush2.xpose.msra.mxu0 0.0
        %1616 = vmatprep.subr.mxu0 0.0
        %1617 = vmatpush2.xpose.msra.mxu0 0.0
        %1618 = vmatprep.subr.mxu0 0.0
        %1619 = vmatpush2.xpose.msra.mxu0 0.0
        %1620 = vmatprep.subr.mxu0 0.0
        %1621 = vmatpush2.xpose.msra.mxu0 0.0
        %1622 = vmatprep.mubr.f32.mxu0 0.0
        %1623 = vmatmul.mubr.f32.gmra.mxu0 %v1544
        %v1624 = vpop.f32.mrf.mxu0
        %v1625 = vadd.f32 %v1541, %v1624
        %v1626 = vpop.f32.mrf.mxu0
        %1627 = vdwg.mxu0
        %1628 = vst.msk [vmem:[%s556] sm:$0xff] %vm576, %v1625
        %s1629 = sand.u32 %s314, 1
        %s1630 = scalar_lea.sflag [#allocation4], %s1629
        %s1631 = sand.u32 %s314, 1
        %s1632 = smul.addr %s1631, 8
        %s1633 = scalar_lea.vmem [#allocation13], %s1632
        // Predicated region
        $region93: #{_self_attention_forward.1} parent=67 // pred_check
          %p1634 = pneg %p324
        $region94: #{_self_attention_forward.1} parent=67 // pred_check_branch
          %1636 = sbr.rel (%p1634) target = $region96
        $region95: #{_self_attention_forward.1} parent=67 // pred_region
          %s1638 = ssub.s32 128, 128
          %1639 = vsyncadd %s1630, %s1638
          %s1640 = smul.addr %s34, 128
          %s1641 = scalar_lea.hbm %s12, %s1640
          %s1643 = sshll.u32 %s1633, 4
          %s1644 = int_to_ptr.vmem [resolvable:$true] %s1643
          %1646 = dma.vmem_to_hbm [thread:$0]  %s1644, 128, %s1641, %s1630
        $region96: #{_self_attention_forward.1} parent=67 // pred_fallthru
          _
      $region68: #{_self_attention_forward.1} parent=5 // pred_fallthru
        _
      %p1647 = scmp.le.s32.totalorder 2, %s29
      // Predicated region
      $region97: #{_self_attention_forward.1} parent=5 // pred_check
        %p1648 = pneg %p1647
      $region98: #{_self_attention_forward.1} parent=5 // pred_check_branch
        %1650 = sbr.rel (%p1648) target = $region100
      $region99: #{_self_attention_forward.1} parent=5 // pred_region
        %s1651 = ssub.s32 %s29, 2
        // Predicated region
        $region101: #{_self_attention_forward.1} parent=99 // pred_check
          %p1652 = pneg %p330
        $region102: #{_self_attention_forward.1} parent=99 // pred_check_branch
          %1654 = sbr.rel (%p1652) target = $region104
        $region103: #{_self_attention_forward.1} parent=99 // pred_region
          %s1655 = sand.u32 %s315, 1
          %s1656 = scalar_lea.sflag [#allocation4], %s1655
          %s1657 = sand.u32 %s315, 1
          %s1658 = smul.addr %s1657, 8
          %s1659 = scalar_lea.vmem [#allocation13], %s1658
          %1660 = dma.done %s1656, 128
        $region104: #{_self_attention_forward.1} parent=99 // pred_fallthru
          _
      $region100: #{_self_attention_forward.1} parent=5 // pred_fallthru
        _
    $region6: #{_self_attention_forward.1} parent=1 // loop_footer
      %s33 = sadd.s32 1, %s29
    $region7: #{_self_attention_forward.1} parent=1 // loop_footer_branch
      %28 = sbr.rel target = $region3
    $region8: #{_self_attention_forward.1} parent=1 // loop_exit
      _
    %1661 = vsyncpa [#allocation3], 1
    %s1662 = scalar_lea.sflag [#allocation3], 1
    %1663 = vsyncpa %s1662, 1
    %1664 = vsyncpa [#allocation6], 1
    %s1665 = scalar_lea.sflag [#allocation6], 1
    %1666 = vsyncpa %s1665, 1
    %1667 = vsyncpa [#allocation9], 1
    %1668 = vsyncpa [#allocation12], 1
    %1669 = vsyncpa [#allocation4], 1
    %s1670 = scalar_lea.sflag [#allocation4], 1
    %1671 = vsyncpa %s1670, 1

</llo_original>
